<compile_context>
chip_gen: v6e
topology: v6e:2x2x1
jax: 0.10.0
libtpu: 0.0.40
codegen_flags: <defaults>
</compile_context>

<pallas_src>
from functools import partial

import jax
import jax.numpy as jnp
from jax.experimental import pallas as pl
from jax.experimental.pallas import tpu as pltpu


# --------------------------- fused cross-attention kernel ---------------------------
def _fused_cross_attention_kernel(
    xq_ref, xkv_ref,
    qg_ref, qb_ref, kvg_ref, kvb_ref,
    wq_ref, wk_ref, wv_ref, wo_ref, bo_ref,
    o_ref,
    q_scr, acc_scr, m_scr, l_scr,
    *, heads, head_dim, eps, compute_dtype,
):
    f32 = jnp.float32
    kv_step = pl.program_id(2)
    d = head_dim

    def layernorm(x, g, b):
        mu = jnp.mean(x, axis=-1, keepdims=True)
        var = jnp.mean((x - mu) ** 2, axis=-1, keepdims=True)
        return (x - mu) * jax.lax.rsqrt(var + eps) * g + b

    # ---- first KV step for this (batch, q-tile): LN + project Q, init online state.
    @pl.when(kv_step == 0)
    def _init():
        xq = xq_ref[0].astype(f32)                                   # (tq, Dq)
        xqn = layernorm(xq, qg_ref[...].astype(f32), qb_ref[...].astype(f32))
        # softmax scale is pre-folded into wq (wrapper), so q already carries it.
        q_scr[...] = jnp.dot(xqn.astype(compute_dtype), wq_ref[...],
                             preferred_element_type=f32).astype(compute_dtype)
        m_scr[...] = jnp.full_like(m_scr, -jnp.inf)
        l_scr[...] = jnp.zeros_like(l_scr)
        acc_scr[...] = jnp.zeros_like(acc_scr)

    # ---- every KV step: LN + wide lane-dense K/V projections (single cast to MXU dtype).
    xkv = xkv_ref[0].astype(f32)                                     # (tk, Dkv)
    xkvn = layernorm(xkv, kvg_ref[...].astype(f32),
                     kvb_ref[...].astype(f32)).astype(compute_dtype)
    k2d = jnp.dot(xkvn, wk_ref[...], preferred_element_type=f32).astype(compute_dtype)
    v2d = jnp.dot(xkvn, wv_ref[...], preferred_element_type=f32).astype(compute_dtype)

    # ---- per-head online softmax; unnormalized P@V accumulated into the (tq, inner) slab.
    for h in range(heads):                                           # static unroll
        qh = q_scr[:, h * d:(h + 1) * d]                             # (tq, d)
        kh = k2d[:, h * d:(h + 1) * d]                               # (tk, d)
        vh = v2d[:, h * d:(h + 1) * d]                               # (tk, d)

        # Q @ K^T via dot_general on last dims (no explicit transpose of K).
        sim = jax.lax.dot_general(qh, kh, (((1,), (1,)), ((), ())),
                                  preferred_element_type=f32)        # (tq, tk)

        m_prev = m_scr[h]                                            # (tq, 1)
        m_new = jnp.maximum(m_prev, jnp.max(sim, axis=-1, keepdims=True))
        alpha = jnp.exp(m_prev - m_new)
        p = jnp.exp(sim - m_new)                                     # p <= 1 -> bf16-safe
        l_scr[h] = alpha * l_scr[h] + jnp.sum(p, axis=-1, keepdims=True)
        pv = jnp.dot(p.astype(compute_dtype), vh,
                     preferred_element_type=f32)                     # (tq, d)
        acc_scr[:, h * d:(h + 1) * d] = alpha * acc_scr[:, h * d:(h + 1) * d] + pv
        m_scr[h] = m_new

    # ---- last KV step: deferred normalization, one K=inner output matmul, bias, store.
    @pl.when(kv_step == pl.num_programs(2) - 1)
    def _finalize():
        for h in range(heads):
            inv_l = pl.reciprocal(l_scr[h], approx=True)             # EUP slot, ~free
            acc_scr[:, h * d:(h + 1) * d] = acc_scr[:, h * d:(h + 1) * d] * inv_l
        out = jnp.dot(acc_scr[...].astype(compute_dtype), wo_ref[...],
                      preferred_element_type=f32)                    # (tq, Dq_pad)
        out = out + bo_ref[...].astype(f32)
        # NB: attention dropout is an inference-time no-op.
        o_ref[0] = out.astype(o_ref.dtype)


def _pick_tile(n, target):
    """Largest t <= target dividing n that is a sublane multiple (or n itself)."""
    for t in range(min(n, target), 0, -1):
        if n % t == 0 and (t % 8 == 0 or t == n):
            return t
    return n


def cross_attention(x_q, x_kv, params, heads, head_dim,
                    compute_dtype=jnp.bfloat16, eps=1e-5,
                    q_tile=None, kv_tile=None):
    """Fused CrossAttention forward. x_q: (B,Nq,q_dim), x_kv: (B,Nk,kv_dim)."""
    B, Nq, Dq = x_q.shape
    _, Nk, Dkv = x_kv.shape
    inner = heads * head_dim
    scale = head_dim ** (-0.5)
    cdt = compute_dtype

    tq = q_tile if q_tile is not None else _pick_tile(Nq, 256)
    tk = kv_tile if kv_tile is not None else _pick_tile(Nk, 512)
    assert Nq % tq == 0 and Nk % tk == 0, "tiles must divide Nq / Nk"

    Dq_pad = ((Dq + 127) // 128) * 128          # lane-dense output stores

    # Trace-time weight preprocessing (one-time): fold softmax scale into Wq,
    # split Wkv, pad Wo/bias to the lane-dense output width, cast MXU operands.
    wq = (params["wq"] * scale).astype(cdt)                   # (Dq, inner)
    wk = params["wkv"][:, :inner].astype(cdt)                 # (Dkv, inner)
    wv = params["wkv"][:, inner:].astype(cdt)                 # (Dkv, inner)
    wo = params["wo"].astype(cdt)                             # (inner, Dq)
    bo = params["bo"].astype(jnp.float32)                     # (Dq,)
    if Dq_pad != Dq:
        wo = jnp.pad(wo, ((0, 0), (0, Dq_pad - Dq)))
        bo = jnp.pad(bo, ((0, Dq_pad - Dq),))
    bo = bo.reshape(1, Dq_pad)

    grid = (B, Nq // tq, Nk // tk)

    # VMEM budget estimate (double-buffered blocks + scratch + in-kernel temporaries).
    bpe_c = jnp.dtype(cdt).itemsize
    bpe_x = x_q.dtype.itemsize
    est = (
        2 * tq * Dq * bpe_x                       # x_q block
        + 2 * tk * Dkv * bpe_x                    # x_kv block
        + 2 * tq * Dq_pad * bpe_x                 # output block
        + 4 * (Dq + Dkv) * 4                      # LN params
        + 2 * (Dq * inner + 2 * Dkv * inner + inner * Dq_pad) * bpe_c  # weights
        + 2 * Dq_pad * 4                          # bias
        + tq * inner * (bpe_c + 4)                # q scratch + f32 accumulator
        + 2 * heads * tq * 128 * 4                # m / l scratch (lane-padded)
        + tk * inner * (4 + 2 * bpe_c)            # K/V projection temporaries
        + heads * tq * tk * 4 * 2                 # sim/p temporaries (static unroll)
    )
    vmem_limit = min(max(int(est * 1.5) + (4 << 20), 32 << 20), 64 << 20)

    kernel = partial(
        _fused_cross_attention_kernel,
        heads=heads, head_dim=head_dim, eps=eps, compute_dtype=cdt,
    )

    const2d = lambda b, i, k: (0, 0)   # constant-index weight/param blocks

    grid_spec = pltpu.PrefetchScalarGridSpec(
        num_scalar_prefetch=0,
        grid=grid,
        in_specs=[
            pl.BlockSpec((1, tq, Dq), lambda b, i, k: (b, i, 0)),    # x_q
            pl.BlockSpec((1, tk, Dkv), lambda b, i, k: (b, k, 0)),   # x_kv
            pl.BlockSpec((1, Dq), const2d),                          # q LN gamma
            pl.BlockSpec((1, Dq), const2d),                          # q LN beta
            pl.BlockSpec((1, Dkv), const2d),                         # kv LN gamma
            pl.BlockSpec((1, Dkv), const2d),                         # kv LN beta
            pl.BlockSpec((Dq, inner), const2d),                      # wq (scale folded)
            pl.BlockSpec((Dkv, inner), const2d),                     # wk
            pl.BlockSpec((Dkv, inner), const2d),                     # wv
            pl.BlockSpec((inner, Dq_pad), const2d),                  # wo
            pl.BlockSpec((1, Dq_pad), const2d),                      # bo
        ],
        out_specs=pl.BlockSpec((1, tq, Dq_pad), lambda b, i, k: (b, i, 0)),
        scratch_shapes=[
            pltpu.VMEM((tq, inner), cdt),            # projected (scaled) Q
            pltpu.VMEM((tq, inner), jnp.float32),    # unnormalized output accumulator
            pltpu.VMEM((heads, tq, 1), jnp.float32), # running max per head
            pltpu.VMEM((heads, tq, 1), jnp.float32), # running denom per head
        ],
    )

    out = pl.pallas_call(
        kernel,
        out_shape=jax.ShapeDtypeStruct((B, Nq, Dq_pad), x_q.dtype),
        grid_spec=grid_spec,
        compiler_params=pltpu.CompilerParams(
            dimension_semantics=("parallel", "parallel", "arbitrary"),
            vmem_limit_bytes=vmem_limit,
        ),
    )(
        x_q, x_kv,
        params["q_gamma"].reshape(1, Dq).astype(jnp.float32),
        params["q_beta"].reshape(1, Dq).astype(jnp.float32),
        params["kv_gamma"].reshape(1, Dkv).astype(jnp.float32),
        params["kv_beta"].reshape(1, Dkv).astype(jnp.float32),
        wq, wk, wv, wo, bo,
    )
    if Dq_pad != Dq:
        out = out[..., :Dq]
    return out


# --------------------------------- parameters ---------------------------------
def init_params(key, q_dim, kv_dim, heads, head_dim):
    inner = heads * head_dim
    k1, k2, k3, k4 = jax.random.split(key, 4)
    return {
        "q_gamma": jnp.ones((q_dim,), jnp.float32),
        "q_beta": jnp.zeros((q_dim,), jnp.float32),
        "kv_gamma": jnp.ones((kv_dim,), jnp.float32),
        "kv_beta": jnp.zeros((kv_dim,), jnp.float32),
        # stored already-transposed: y = x @ w
        "wq": 0.02 * jax.random.normal(k1, (q_dim, inner), jnp.float32),
        "wkv": 0.02 * jax.random.normal(k2, (kv_dim, 2 * inner), jnp.float32),
        "wo": 0.02 * jax.random.normal(k3, (inner, q_dim), jnp.float32),
        "bo": 0.02 * jax.random.normal(k4, (q_dim,), jnp.float32),
    }


# ------------------------------ pure-JAX reference ------------------------------
def cross_attention_ref(x_q, x_kv, params, heads, head_dim):
    def ln(x, g, b):
        m = x.mean(-1, keepdims=True)
        v = ((x - m) ** 2).mean(-1, keepdims=True)
        return (x - m) / jnp.sqrt(v + 1e-5) * g + b

    B, Nq, Dq = x_q.shape
    _, Nk, _ = x_kv.shape
    inner = heads * head_dim
    scale = head_dim ** (-0.5)
    xq = ln(x_q, params["q_gamma"], params["q_beta"])
    xkv = ln(x_kv, params["kv_gamma"], params["kv_beta"])
    q = xq @ params["wq"]
    kv = xkv @ params["wkv"]
    k, v = kv[..., :inner], kv[..., inner:]
    sh = lambda t, n: t.reshape(B, n, heads, head_dim).transpose(0, 2, 1, 3)
    qh, kh, vh = sh(q, Nq), sh(k, Nk), sh(v, Nk)
    sim = jnp.einsum("bhid,bhjd->bhij", qh, kh) * scale
    attn = jax.nn.softmax(sim, axis=-1)
    out = jnp.einsum("bhij,bhjd->bhid", attn, vh)
    out = out.transpose(0, 2, 1, 3).reshape(B, Nq, inner)
    return out @ params["wo"] + params["bo"]


if __name__ == "__main__":
    B, Nq, Nkv = 2, 8, 16
    q_dim, kv_dim = 32, 16
    heads, head_dim = 4, 8
    # dropout = 0.0 -> inference: nn.Dropout is identity

    key = jax.random.PRNGKey(0)
    kx, kkv, kp = jax.random.split(key, 3)
    x_q = jax.random.normal(kx, (B, Nq, q_dim), jnp.float32)
    x_kv = jax.random.normal(kkv, (B, Nkv, kv_dim), jnp.float32)
    params = init_params(kp, q_dim, kv_dim, heads, head_dim)

    ref = cross_attention_ref(x_q, x_kv, params, heads, head_dim)

    # Tight numerical check: f32 MXU operands; kv_tile=8 forces 2 KV grid steps so the
    # online-softmax accumulation path is exercised even at demo sizes.
    out_f32 = cross_attention(x_q, x_kv, params, heads, head_dim,
                              compute_dtype=jnp.float32, kv_tile=8)
    out_f32 = jax.block_until_ready(out_f32)
    assert out_f32.shape == (B, Nq, q_dim)
    assert jnp.allclose(out_f32, ref, atol=2e-3, rtol=2e-3), "f32 mismatch vs reference"

    # Production path: bf16 MXU operands (default), f32 accumulation; looser tolerance.
    out_bf16 = cross_attention(x_q, x_kv, params, heads, head_dim)
    out_bf16 = jax.block_until_ready(out_bf16)
    assert out_bf16.shape == (B, Nq, q_dim)
    assert jnp.allclose(out_bf16, ref, atol=2e-2, rtol=0.0), "bf16 mismatch vs reference"

    print("KERNEL_OK")
</pallas_src>

<mosaic_0001>
module attributes {stable_mosaic.version = 11 : i64} {
  func.func @_fused_cross_attention_kernel(%arg0: i32, %arg1: i32, %arg2: i32, %arg3: memref<1x8x32xf32, #tpu.memory_space<vmem>>, %arg4: memref<1x8x16xf32, #tpu.memory_space<vmem>>, %arg5: memref<1x32xf32, #tpu.memory_space<vmem>>, %arg6: memref<1x32xf32, #tpu.memory_space<vmem>>, %arg7: memref<1x16xf32, #tpu.memory_space<vmem>>, %arg8: memref<1x16xf32, #tpu.memory_space<vmem>>, %arg9: memref<32x32xf32, #tpu.memory_space<vmem>>, %arg10: memref<16x32xf32, #tpu.memory_space<vmem>>, %arg11: memref<16x32xf32, #tpu.memory_space<vmem>>, %arg12: memref<32x128xf32, #tpu.memory_space<vmem>>, %arg13: memref<1x128xf32, #tpu.memory_space<vmem>>, %arg14: memref<1x8x128xf32, #tpu.memory_space<vmem>>, %arg15: memref<8x32xf32, #tpu.memory_space<vmem>>, %arg16: memref<8x32xf32, #tpu.memory_space<vmem>>, %arg17: memref<4x8x1xf32, #tpu.memory_space<vmem>>, %arg18: memref<4x8x1xf32, #tpu.memory_space<vmem>>) attributes {dimension_semantics = [#tpu.dimension_semantics<parallel>, #tpu.dimension_semantics<parallel>, #tpu.dimension_semantics<arbitrary>], iteration_bounds = array<i64: 2, 1, 2>, scalar_prefetch = 0 : i64, scratch_operands = 4 : i64, tpu.core_type = #tpu.core_type<tc>, window_params = [{transform_indices = @transform_0, window_bounds = array<i64: 1, 8, 32>}, {transform_indices = @transform_1, window_bounds = array<i64: 1, 8, 16>}, {pipeline_mode = #tpu.pipeline_mode<synchronous>, transform_indices = @transform_2, window_bounds = array<i64: 1, 32>}, {pipeline_mode = #tpu.pipeline_mode<synchronous>, transform_indices = @transform_3, window_bounds = array<i64: 1, 32>}, {pipeline_mode = #tpu.pipeline_mode<synchronous>, transform_indices = @transform_4, window_bounds = array<i64: 1, 16>}, {pipeline_mode = #tpu.pipeline_mode<synchronous>, transform_indices = @transform_5, window_bounds = array<i64: 1, 16>}, {pipeline_mode = #tpu.pipeline_mode<synchronous>, transform_indices = @transform_6, window_bounds = array<i64: 32, 32>}, {pipeline_mode = #tpu.pipeline_mode<synchronous>, transform_indices = @transform_7, window_bounds = array<i64: 16, 32>}, {pipeline_mode = #tpu.pipeline_mode<synchronous>, transform_indices = @transform_8, window_bounds = array<i64: 16, 32>}, {pipeline_mode = #tpu.pipeline_mode<synchronous>, transform_indices = @transform_9, window_bounds = array<i64: 32, 128>}, {pipeline_mode = #tpu.pipeline_mode<synchronous>, transform_indices = @transform_10, window_bounds = array<i64: 1, 128>}, {transform_indices = @transform_11, window_bounds = array<i64: 1, 8, 128>}]} {
    %c0_i32 = arith.constant 0 : i32
    %0 = arith.cmpi eq, %arg2, %c0_i32 : i32
    %1 = arith.extui %0 : i1 to i32
    %c0_i32_0 = arith.constant 0 : i32
    %2 = arith.cmpi ne, %1, %c0_i32_0 : i32
    scf.if %2 {
      %c0_100 = arith.constant 0 : index
      %c0_101 = arith.constant 0 : index
      %c0_102 = arith.constant 0 : index
      %164 = vector.load %arg3[%c0_100, %c0_101, %c0_102] : memref<1x8x32xf32, #tpu.memory_space<vmem>>, vector<1x8x32xf32>
      %165 = vector.shape_cast %164 : vector<1x8x32xf32> to vector<8x32xf32>
      %c0_103 = arith.constant 0 : index
      %c0_104 = arith.constant 0 : index
      %166 = vector.load %arg5[%c0_103, %c0_104] : memref<1x32xf32, #tpu.memory_space<vmem>>, vector<1x32xf32>
      %c0_105 = arith.constant 0 : index
      %c0_106 = arith.constant 0 : index
      %167 = vector.load %arg6[%c0_105, %c0_106] : memref<1x32xf32, #tpu.memory_space<vmem>>, vector<1x32xf32>
      %cst_107 = arith.constant dense<0.000000e+00> : vector<8xf32>
      %168 = vector.multi_reduction <add>, %165, %cst_107 [1] : vector<8x32xf32> to vector<8xf32>
      %169 = vector.shape_cast %168 : vector<8xf32> to vector<8x1xf32>
      %cst_108 = arith.constant 3.200000e+01 : f32
      %170 = vector.broadcast %cst_108 : f32 to vector<8x1xf32>
      %171 = arith.divf %169, %170 : vector<8x1xf32>
      %172 = vector.broadcast %171 : vector<8x1xf32> to vector<8x32xf32>
      %173 = arith.subf %165, %172 : vector<8x32xf32>
      %174 = arith.mulf %173, %173 : vector<8x32xf32>
      %cst_109 = arith.constant dense<0.000000e+00> : vector<8xf32>
      %175 = vector.multi_reduction <add>, %174, %cst_109 [1] : vector<8x32xf32> to vector<8xf32>
      %176 = vector.shape_cast %175 : vector<8xf32> to vector<8x1xf32>
      %cst_110 = arith.constant 3.200000e+01 : f32
      %177 = vector.broadcast %cst_110 : f32 to vector<8x1xf32>
      %178 = arith.divf %176, %177 : vector<8x1xf32>
      %179 = vector.broadcast %171 : vector<8x1xf32> to vector<8x32xf32>
      %180 = arith.subf %165, %179 : vector<8x32xf32>
      %cst_111 = arith.constant 9.99999974E-6 : f32
      %181 = vector.broadcast %cst_111 : f32 to vector<8x1xf32>
      %182 = arith.addf %178, %181 : vector<8x1xf32>
      %183 = math.rsqrt %182 : vector<8x1xf32>
      %184 = vector.broadcast %183 : vector<8x1xf32> to vector<8x32xf32>
      %185 = arith.mulf %180, %184 : vector<8x32xf32>
      %186 = vector.broadcast %166 : vector<1x32xf32> to vector<8x32xf32>
      %187 = arith.mulf %185, %186 : vector<8x32xf32>
      %188 = vector.broadcast %167 : vector<1x32xf32> to vector<8x32xf32>
      %189 = arith.addf %187, %188 : vector<8x32xf32>
      %c0_112 = arith.constant 0 : index
      %c0_113 = arith.constant 0 : index
      %190 = vector.load %arg9[%c0_112, %c0_113] : memref<32x32xf32, #tpu.memory_space<vmem>>, vector<32x32xf32>
      %cst_114 = arith.constant dense<0.000000e+00> : vector<8x32xf32>
      %191 = tpu.matmul %189, %190, %cst_114 {dimension_numbers = #tpu.dot_dimension_numbers<[1], [0], [0], [1], [0, 0, 1, 1], [], []>} : vector<8x32xf32>, vector<32x32xf32>, vector<8x32xf32> -> vector<8x32xf32>
      %c0_115 = arith.constant 0 : index
      %c0_116 = arith.constant 0 : index
      %192 = vector.load %arg15[%c0_115, %c0_116] : memref<8x32xf32, #tpu.memory_space<vmem>>, vector<8x32xf32>
      tpu.vector_store %arg15[%c0_115, %c0_116], %191 {strides = array<i32>} : memref<8x32xf32, #tpu.memory_space<vmem>>, vector<8x32xf32>,
      %cst_117 = arith.constant 0xFF800000 : f32
      %193 = vector.broadcast %cst_117 : f32 to vector<4x8x1xf32>
      %c0_118 = arith.constant 0 : index
      %c0_119 = arith.constant 0 : index
      %c0_120 = arith.constant 0 : index
      %194 = vector.load %arg17[%c0_118, %c0_119, %c0_120] : memref<4x8x1xf32, #tpu.memory_space<vmem>>, vector<4x8x1xf32>
      tpu.vector_store %arg17[%c0_118, %c0_119, %c0_120], %193 {strides = array<i32>} : memref<4x8x1xf32, #tpu.memory_space<vmem>>, vector<4x8x1xf32>,
      %cst_121 = arith.constant 0.000000e+00 : f32
      %195 = vector.broadcast %cst_121 : f32 to vector<4x8x1xf32>
      %c0_122 = arith.constant 0 : index
      %c0_123 = arith.constant 0 : index
      %c0_124 = arith.constant 0 : index
      %196 = vector.load %arg18[%c0_122, %c0_123, %c0_124] : memref<4x8x1xf32, #tpu.memory_space<vmem>>, vector<4x8x1xf32>
      tpu.vector_store %arg18[%c0_122, %c0_123, %c0_124], %195 {strides = array<i32>} : memref<4x8x1xf32, #tpu.memory_space<vmem>>, vector<4x8x1xf32>,
      %cst_125 = arith.constant 0.000000e+00 : f32
      %197 = vector.broadcast %cst_125 : f32 to vector<8x32xf32>
      %c0_126 = arith.constant 0 : index
      %c0_127 = arith.constant 0 : index
      %198 = vector.load %arg16[%c0_126, %c0_127] : memref<8x32xf32, #tpu.memory_space<vmem>>, vector<8x32xf32>
      tpu.vector_store %arg16[%c0_126, %c0_127], %197 {strides = array<i32>} : memref<8x32xf32, #tpu.memory_space<vmem>>, vector<8x32xf32>,
    } else {
    }
    %c0 = arith.constant 0 : index
    %c0_1 = arith.constant 0 : index
    %c0_2 = arith.constant 0 : index
    %3 = vector.load %arg4[%c0, %c0_1, %c0_2] : memref<1x8x16xf32, #tpu.memory_space<vmem>>, vector<1x8x16xf32>
    %4 = vector.shape_cast %3 : vector<1x8x16xf32> to vector<8x16xf32>
    %c0_3 = arith.constant 0 : index
    %c0_4 = arith.constant 0 : index
    %5 = vector.load %arg7[%c0_3, %c0_4] : memref<1x16xf32, #tpu.memory_space<vmem>>, vector<1x16xf32>
    %c0_5 = arith.constant 0 : index
    %c0_6 = arith.constant 0 : index
    %6 = vector.load %arg8[%c0_5, %c0_6] : memref<1x16xf32, #tpu.memory_space<vmem>>, vector<1x16xf32>
    %cst = arith.constant dense<0.000000e+00> : vector<8xf32>
    %7 = vector.multi_reduction <add>, %4, %cst [1] : vector<8x16xf32> to vector<8xf32>
    %8 = vector.shape_cast %7 : vector<8xf32> to vector<8x1xf32>
    %cst_7 = arith.constant 1.600000e+01 : f32
    %9 = vector.broadcast %cst_7 : f32 to vector<8x1xf32>
    %10 = arith.divf %8, %9 : vector<8x1xf32>
    %11 = vector.broadcast %10 : vector<8x1xf32> to vector<8x16xf32>
    %12 = arith.subf %4, %11 : vector<8x16xf32>
    %13 = arith.mulf %12, %12 : vector<8x16xf32>
    %cst_8 = arith.constant dense<0.000000e+00> : vector<8xf32>
    %14 = vector.multi_reduction <add>, %13, %cst_8 [1] : vector<8x16xf32> to vector<8xf32>
    %15 = vector.shape_cast %14 : vector<8xf32> to vector<8x1xf32>
    %cst_9 = arith.constant 1.600000e+01 : f32
    %16 = vector.broadcast %cst_9 : f32 to vector<8x1xf32>
    %17 = arith.divf %15, %16 : vector<8x1xf32>
    %18 = vector.broadcast %10 : vector<8x1xf32> to vector<8x16xf32>
    %19 = arith.subf %4, %18 : vector<8x16xf32>
    %cst_10 = arith.constant 9.99999974E-6 : f32
    %20 = vector.broadcast %cst_10 : f32 to vector<8x1xf32>
    %21 = arith.addf %17, %20 : vector<8x1xf32>
    %22 = math.rsqrt %21 : vector<8x1xf32>
    %23 = vector.broadcast %22 : vector<8x1xf32> to vector<8x16xf32>
    %24 = arith.mulf %19, %23 : vector<8x16xf32>
    %25 = vector.broadcast %5 : vector<1x16xf32> to vector<8x16xf32>
    %26 = arith.mulf %24, %25 : vector<8x16xf32>
    %27 = vector.broadcast %6 : vector<1x16xf32> to vector<8x16xf32>
    %28 = arith.addf %26, %27 : vector<8x16xf32>
    %c0_11 = arith.constant 0 : index
    %c0_12 = arith.constant 0 : index
    %29 = vector.load %arg10[%c0_11, %c0_12] : memref<16x32xf32, #tpu.memory_space<vmem>>, vector<16x32xf32>
    %cst_13 = arith.constant dense<0.000000e+00> : vector<8x32xf32>
    %30 = tpu.matmul %28, %29, %cst_13 {dimension_numbers = #tpu.dot_dimension_numbers<[1], [0], [0], [1], [0, 0, 1, 1], [], []>} : vector<8x16xf32>, vector<16x32xf32>, vector<8x32xf32> -> vector<8x32xf32>
    %c0_14 = arith.constant 0 : index
    %c0_15 = arith.constant 0 : index
    %31 = vector.load %arg11[%c0_14, %c0_15] : memref<16x32xf32, #tpu.memory_space<vmem>>, vector<16x32xf32>
    %cst_16 = arith.constant dense<0.000000e+00> : vector<8x32xf32>
    %32 = tpu.matmul %28, %31, %cst_16 {dimension_numbers = #tpu.dot_dimension_numbers<[1], [0], [0], [1], [0, 0, 1, 1], [], []>} : vector<8x16xf32>, vector<16x32xf32>, vector<8x32xf32> -> vector<8x32xf32>
    %c0_17 = arith.constant 0 : index
    %c0_18 = arith.constant 0 : index
    %33 = vector.load %arg15[%c0_17, %c0_18] : memref<8x32xf32, #tpu.memory_space<vmem>>, vector<8x8xf32>
    %34 = vector.extract_strided_slice %30 {offsets = [0, 0], sizes = [8, 8], strides = [1, 1]} : vector<8x32xf32> to vector<8x8xf32>
    %35 = vector.extract_strided_slice %32 {offsets = [0, 0], sizes = [8, 8], strides = [1, 1]} : vector<8x32xf32> to vector<8x8xf32>
    %cst_19 = arith.constant dense<0.000000e+00> : vector<8x8xf32>
    %36 = tpu.matmul %33, %34, %cst_19 {dimension_numbers = #tpu.dot_dimension_numbers<[1], [1], [0], [0], [0, 0, 1, 0], [], []>} : vector<8x8xf32>, vector<8x8xf32>, vector<8x8xf32> -> vector<8x8xf32>
    %c0_20 = arith.constant 0 : index
    %c0_21 = arith.constant 0 : index
    %c0_22 = arith.constant 0 : index
    %37 = vector.load %arg17[%c0_20, %c0_21, %c0_22] : memref<4x8x1xf32, #tpu.memory_space<vmem>>, vector<1x8x1xf32>
    %38 = vector.shape_cast %37 : vector<1x8x1xf32> to vector<8x1xf32>
    %cst_23 = arith.constant dense<0xFF800000> : vector<8xf32>
    %39 = vector.multi_reduction <maximumf>, %36, %cst_23 [1] : vector<8x8xf32> to vector<8xf32>
    %40 = vector.shape_cast %39 : vector<8xf32> to vector<8x1xf32>
    %41 = arith.maximumf %38, %40 : vector<8x1xf32>
    %42 = arith.subf %38, %41 : vector<8x1xf32>
    %43 = math.exp %42 : vector<8x1xf32>
    %44 = vector.broadcast %41 : vector<8x1xf32> to vector<8x8xf32>
    %45 = arith.subf %36, %44 : vector<8x8xf32>
    %46 = math.exp %45 : vector<8x8xf32>
    %c0_24 = arith.constant 0 : index
    %c0_25 = arith.constant 0 : index
    %c0_26 = arith.constant 0 : index
    %47 = vector.load %arg18[%c0_24, %c0_25, %c0_26] : memref<4x8x1xf32, #tpu.memory_space<vmem>>, vector<1x8x1xf32>
    %48 = vector.shape_cast %47 : vector<1x8x1xf32> to vector<8x1xf32>
    %49 = arith.mulf %43, %48 : vector<8x1xf32>
    %cst_27 = arith.constant dense<0.000000e+00> : vector<8xf32>
    %50 = vector.multi_reduction <add>, %46, %cst_27 [1] : vector<8x8xf32> to vector<8xf32>
    %51 = vector.shape_cast %50 : vector<8xf32> to vector<8x1xf32>
    %52 = arith.addf %49, %51 : vector<8x1xf32>
    %c0_28 = arith.constant 0 : index
    %c0_29 = arith.constant 0 : index
    %c0_30 = arith.constant 0 : index
    %53 = vector.load %arg18[%c0_28, %c0_29, %c0_30] : memref<4x8x1xf32, #tpu.memory_space<vmem>>, vector<1x8x1xf32>
    %54 = vector.shape_cast %53 : vector<1x8x1xf32> to vector<8x1xf32>
    %55 = vector.shape_cast %52 : vector<8x1xf32> to vector<1x8x1xf32>
    tpu.vector_store %arg18[%c0_28, %c0_29, %c0_30], %55 {strides = array<i32>} : memref<4x8x1xf32, #tpu.memory_space<vmem>>, vector<1x8x1xf32>,
    %cst_31 = arith.constant dense<0.000000e+00> : vector<8x8xf32>
    %56 = tpu.matmul %46, %35, %cst_31 {dimension_numbers = #tpu.dot_dimension_numbers<[1], [0], [0], [1], [0, 0, 1, 1], [], []>} : vector<8x8xf32>, vector<8x8xf32>, vector<8x8xf32> -> vector<8x8xf32>
    %c0_32 = arith.constant 0 : index
    %c0_33 = arith.constant 0 : index
    %57 = vector.load %arg16[%c0_32, %c0_33] : memref<8x32xf32, #tpu.memory_space<vmem>>, vector<8x8xf32>
    %58 = vector.broadcast %43 : vector<8x1xf32> to vector<8x8xf32>
    %59 = arith.mulf %58, %57 : vector<8x8xf32>
    %60 = arith.addf %59, %56 : vector<8x8xf32>
    %c0_34 = arith.constant 0 : index
    %c0_35 = arith.constant 0 : index
    %61 = vector.load %arg16[%c0_34, %c0_35] : memref<8x32xf32, #tpu.memory_space<vmem>>, vector<8x8xf32>
    tpu.vector_store %arg16[%c0_34, %c0_35], %60 {strides = array<i32>} : memref<8x32xf32, #tpu.memory_space<vmem>>, vector<8x8xf32>,
    %c0_36 = arith.constant 0 : index
    %c0_37 = arith.constant 0 : index
    %c0_38 = arith.constant 0 : index
    %62 = vector.load %arg17[%c0_36, %c0_37, %c0_38] : memref<4x8x1xf32, #tpu.memory_space<vmem>>, vector<1x8x1xf32>
    %63 = vector.shape_cast %62 : vector<1x8x1xf32> to vector<8x1xf32>
    %64 = vector.shape_cast %41 : vector<8x1xf32> to vector<1x8x1xf32>
    tpu.vector_store %arg17[%c0_36, %c0_37, %c0_38], %64 {strides = array<i32>} : memref<4x8x1xf32, #tpu.memory_space<vmem>>, vector<1x8x1xf32>,
    %c0_39 = arith.constant 0 : index
    %c8 = arith.constant 8 : index
    %65 = vector.load %arg15[%c0_39, %c8] : memref<8x32xf32, #tpu.memory_space<vmem>>, vector<8x8xf32>
    %66 = vector.extract_strided_slice %30 {offsets = [0, 8], sizes = [8, 8], strides = [1, 1]} : vector<8x32xf32> to vector<8x8xf32>
    %67 = vector.extract_strided_slice %32 {offsets = [0, 8], sizes = [8, 8], strides = [1, 1]} : vector<8x32xf32> to vector<8x8xf32>
    %cst_40 = arith.constant dense<0.000000e+00> : vector<8x8xf32>
    %68 = tpu.matmul %65, %66, %cst_40 {dimension_numbers = #tpu.dot_dimension_numbers<[1], [1], [0], [0], [0, 0, 1, 0], [], []>} : vector<8x8xf32>, vector<8x8xf32>, vector<8x8xf32> -> vector<8x8xf32>
    %c1 = arith.constant 1 : index
    %c0_41 = arith.constant 0 : index
    %c0_42 = arith.constant 0 : index
    %69 = vector.load %arg17[%c1, %c0_41, %c0_42] : memref<4x8x1xf32, #tpu.memory_space<vmem>>, vector<1x8x1xf32>
    %70 = vector.shape_cast %69 : vector<1x8x1xf32> to vector<8x1xf32>
    %cst_43 = arith.constant dense<0xFF800000> : vector<8xf32>
    %71 = vector.multi_reduction <maximumf>, %68, %cst_43 [1] : vector<8x8xf32> to vector<8xf32>
    %72 = vector.shape_cast %71 : vector<8xf32> to vector<8x1xf32>
    %73 = arith.maximumf %70, %72 : vector<8x1xf32>
    %74 = arith.subf %70, %73 : vector<8x1xf32>
    %75 = math.exp %74 : vector<8x1xf32>
    %76 = vector.broadcast %73 : vector<8x1xf32> to vector<8x8xf32>
    %77 = arith.subf %68, %76 : vector<8x8xf32>
    %78 = math.exp %77 : vector<8x8xf32>
    %c1_44 = arith.constant 1 : index
    %c0_45 = arith.constant 0 : index
    %c0_46 = arith.constant 0 : index
    %79 = vector.load %arg18[%c1_44, %c0_45, %c0_46] : memref<4x8x1xf32, #tpu.memory_space<vmem>>, vector<1x8x1xf32>
    %80 = vector.shape_cast %79 : vector<1x8x1xf32> to vector<8x1xf32>
    %81 = arith.mulf %75, %80 : vector<8x1xf32>
    %cst_47 = arith.constant dense<0.000000e+00> : vector<8xf32>
    %82 = vector.multi_reduction <add>, %78, %cst_47 [1] : vector<8x8xf32> to vector<8xf32>
    %83 = vector.shape_cast %82 : vector<8xf32> to vector<8x1xf32>
    %84 = arith.addf %81, %83 : vector<8x1xf32>
    %c1_48 = arith.constant 1 : index
    %c0_49 = arith.constant 0 : index
    %c0_50 = arith.constant 0 : index
    %85 = vector.load %arg18[%c1_48, %c0_49, %c0_50] : memref<4x8x1xf32, #tpu.memory_space<vmem>>, vector<1x8x1xf32>
    %86 = vector.shape_cast %85 : vector<1x8x1xf32> to vector<8x1xf32>
    %87 = vector.shape_cast %84 : vector<8x1xf32> to vector<1x8x1xf32>
    tpu.vector_store %arg18[%c1_48, %c0_49, %c0_50], %87 {strides = array<i32>} : memref<4x8x1xf32, #tpu.memory_space<vmem>>, vector<1x8x1xf32>,
    %cst_51 = arith.constant dense<0.000000e+00> : vector<8x8xf32>
    %88 = tpu.matmul %78, %67, %cst_51 {dimension_numbers = #tpu.dot_dimension_numbers<[1], [0], [0], [1], [0, 0, 1, 1], [], []>} : vector<8x8xf32>, vector<8x8xf32>, vector<8x8xf32> -> vector<8x8xf32>
    %c0_52 = arith.constant 0 : index
    %c8_53 = arith.constant 8 : index
    %89 = vector.load %arg16[%c0_52, %c8_53] : memref<8x32xf32, #tpu.memory_space<vmem>>, vector<8x8xf32>
    %90 = vector.broadcast %75 : vector<8x1xf32> to vector<8x8xf32>
    %91 = arith.mulf %90, %89 : vector<8x8xf32>
    %92 = arith.addf %91, %88 : vector<8x8xf32>
    %c0_54 = arith.constant 0 : index
    %c8_55 = arith.constant 8 : index
    %93 = vector.load %arg16[%c0_54, %c8_55] : memref<8x32xf32, #tpu.memory_space<vmem>>, vector<8x8xf32>
    tpu.vector_store %arg16[%c0_54, %c8_55], %92 {strides = array<i32>} : memref<8x32xf32, #tpu.memory_space<vmem>>, vector<8x8xf32>,
    %c1_56 = arith.constant 1 : index
    %c0_57 = arith.constant 0 : index
    %c0_58 = arith.constant 0 : index
    %94 = vector.load %arg17[%c1_56, %c0_57, %c0_58] : memref<4x8x1xf32, #tpu.memory_space<vmem>>, vector<1x8x1xf32>
    %95 = vector.shape_cast %94 : vector<1x8x1xf32> to vector<8x1xf32>
    %96 = vector.shape_cast %73 : vector<8x1xf32> to vector<1x8x1xf32>
    tpu.vector_store %arg17[%c1_56, %c0_57, %c0_58], %96 {strides = array<i32>} : memref<4x8x1xf32, #tpu.memory_space<vmem>>, vector<1x8x1xf32>,
    %c0_59 = arith.constant 0 : index
    %c16 = arith.constant 16 : index
    %97 = vector.load %arg15[%c0_59, %c16] : memref<8x32xf32, #tpu.memory_space<vmem>>, vector<8x8xf32>
    %98 = vector.extract_strided_slice %30 {offsets = [0, 16], sizes = [8, 8], strides = [1, 1]} : vector<8x32xf32> to vector<8x8xf32>
    %99 = vector.extract_strided_slice %32 {offsets = [0, 16], sizes = [8, 8], strides = [1, 1]} : vector<8x32xf32> to vector<8x8xf32>
    %cst_60 = arith.constant dense<0.000000e+00> : vector<8x8xf32>
    %100 = tpu.matmul %97, %98, %cst_60 {dimension_numbers = #tpu.dot_dimension_numbers<[1], [1], [0], [0], [0, 0, 1, 0], [], []>} : vector<8x8xf32>, vector<8x8xf32>, vector<8x8xf32> -> vector<8x8xf32>
    %c2 = arith.constant 2 : index
    %c0_61 = arith.constant 0 : index
    %c0_62 = arith.constant 0 : index
    %101 = vector.load %arg17[%c2, %c0_61, %c0_62] : memref<4x8x1xf32, #tpu.memory_space<vmem>>, vector<1x8x1xf32>
    %102 = vector.shape_cast %101 : vector<1x8x1xf32> to vector<8x1xf32>
    %cst_63 = arith.constant dense<0xFF800000> : vector<8xf32>
    %103 = vector.multi_reduction <maximumf>, %100, %cst_63 [1] : vector<8x8xf32> to vector<8xf32>
    %104 = vector.shape_cast %103 : vector<8xf32> to vector<8x1xf32>
    %105 = arith.maximumf %102, %104 : vector<8x1xf32>
    %106 = arith.subf %102, %105 : vector<8x1xf32>
    %107 = math.exp %106 : vector<8x1xf32>
    %108 = vector.broadcast %105 : vector<8x1xf32> to vector<8x8xf32>
    %109 = arith.subf %100, %108 : vector<8x8xf32>
    %110 = math.exp %109 : vector<8x8xf32>
    %c2_64 = arith.constant 2 : index
    %c0_65 = arith.constant 0 : index
    %c0_66 = arith.constant 0 : index
    %111 = vector.load %arg18[%c2_64, %c0_65, %c0_66] : memref<4x8x1xf32, #tpu.memory_space<vmem>>, vector<1x8x1xf32>
    %112 = vector.shape_cast %111 : vector<1x8x1xf32> to vector<8x1xf32>
    %113 = arith.mulf %107, %112 : vector<8x1xf32>
    %cst_67 = arith.constant dense<0.000000e+00> : vector<8xf32>
    %114 = vector.multi_reduction <add>, %110, %cst_67 [1] : vector<8x8xf32> to vector<8xf32>
    %115 = vector.shape_cast %114 : vector<8xf32> to vector<8x1xf32>
    %116 = arith.addf %113, %115 : vector<8x1xf32>
    %c2_68 = arith.constant 2 : index
    %c0_69 = arith.constant 0 : index
    %c0_70 = arith.constant 0 : index
    %117 = vector.load %arg18[%c2_68, %c0_69, %c0_70] : memref<4x8x1xf32, #tpu.memory_space<vmem>>, vector<1x8x1xf32>
    %118 = vector.shape_cast %117 : vector<1x8x1xf32> to vector<8x1xf32>
    %119 = vector.shape_cast %116 : vector<8x1xf32> to vector<1x8x1xf32>
    tpu.vector_store %arg18[%c2_68, %c0_69, %c0_70], %119 {strides = array<i32>} : memref<4x8x1xf32, #tpu.memory_space<vmem>>, vector<1x8x1xf32>,
    %cst_71 = arith.constant dense<0.000000e+00> : vector<8x8xf32>
    %120 = tpu.matmul %110, %99, %cst_71 {dimension_numbers = #tpu.dot_dimension_numbers<[1], [0], [0], [1], [0, 0, 1, 1], [], []>} : vector<8x8xf32>, vector<8x8xf32>, vector<8x8xf32> -> vector<8x8xf32>
    %c0_72 = arith.constant 0 : index
    %c16_73 = arith.constant 16 : index
    %121 = vector.load %arg16[%c0_72, %c16_73] : memref<8x32xf32, #tpu.memory_space<vmem>>, vector<8x8xf32>
    %122 = vector.broadcast %107 : vector<8x1xf32> to vector<8x8xf32>
    %123 = arith.mulf %122, %121 : vector<8x8xf32>
    %124 = arith.addf %123, %120 : vector<8x8xf32>
    %c0_74 = arith.constant 0 : index
    %c16_75 = arith.constant 16 : index
    %125 = vector.load %arg16[%c0_74, %c16_75] : memref<8x32xf32, #tpu.memory_space<vmem>>, vector<8x8xf32>
    tpu.vector_store %arg16[%c0_74, %c16_75], %124 {strides = array<i32>} : memref<8x32xf32, #tpu.memory_space<vmem>>, vector<8x8xf32>,
    %c2_76 = arith.constant 2 : index
    %c0_77 = arith.constant 0 : index
    %c0_78 = arith.constant 0 : index
    %126 = vector.load %arg17[%c2_76, %c0_77, %c0_78] : memref<4x8x1xf32, #tpu.memory_space<vmem>>, vector<1x8x1xf32>
    %127 = vector.shape_cast %126 : vector<1x8x1xf32> to vector<8x1xf32>
    %128 = vector.shape_cast %105 : vector<8x1xf32> to vector<1x8x1xf32>
    tpu.vector_store %arg17[%c2_76, %c0_77, %c0_78], %128 {strides = array<i32>} : memref<4x8x1xf32, #tpu.memory_space<vmem>>, vector<1x8x1xf32>,
    %c0_79 = arith.constant 0 : index
    %c24 = arith.constant 24 : index
    %129 = vector.load %arg15[%c0_79, %c24] : memref<8x32xf32, #tpu.memory_space<vmem>>, vector<8x8xf32>
    %130 = vector.extract_strided_slice %30 {offsets = [0, 24], sizes = [8, 8], strides = [1, 1]} : vector<8x32xf32> to vector<8x8xf32>
    %131 = vector.extract_strided_slice %32 {offsets = [0, 24], sizes = [8, 8], strides = [1, 1]} : vector<8x32xf32> to vector<8x8xf32>
    %cst_80 = arith.constant dense<0.000000e+00> : vector<8x8xf32>
    %132 = tpu.matmul %129, %130, %cst_80 {dimension_numbers = #tpu.dot_dimension_numbers<[1], [1], [0], [0], [0, 0, 1, 0], [], []>} : vector<8x8xf32>, vector<8x8xf32>, vector<8x8xf32> -> vector<8x8xf32>
    %c3 = arith.constant 3 : index
    %c0_81 = arith.constant 0 : index
    %c0_82 = arith.constant 0 : index
    %133 = vector.load %arg17[%c3, %c0_81, %c0_82] : memref<4x8x1xf32, #tpu.memory_space<vmem>>, vector<1x8x1xf32>
    %134 = vector.shape_cast %133 : vector<1x8x1xf32> to vector<8x1xf32>
    %cst_83 = arith.constant dense<0xFF800000> : vector<8xf32>
    %135 = vector.multi_reduction <maximumf>, %132, %cst_83 [1] : vector<8x8xf32> to vector<8xf32>
    %136 = vector.shape_cast %135 : vector<8xf32> to vector<8x1xf32>
    %137 = arith.maximumf %134, %136 : vector<8x1xf32>
    %138 = arith.subf %134, %137 : vector<8x1xf32>
    %139 = math.exp %138 : vector<8x1xf32>
    %140 = vector.broadcast %137 : vector<8x1xf32> to vector<8x8xf32>
    %141 = arith.subf %132, %140 : vector<8x8xf32>
    %142 = math.exp %141 : vector<8x8xf32>
    %c3_84 = arith.constant 3 : index
    %c0_85 = arith.constant 0 : index
    %c0_86 = arith.constant 0 : index
    %143 = vector.load %arg18[%c3_84, %c0_85, %c0_86] : memref<4x8x1xf32, #tpu.memory_space<vmem>>, vector<1x8x1xf32>
    %144 = vector.shape_cast %143 : vector<1x8x1xf32> to vector<8x1xf32>
    %145 = arith.mulf %139, %144 : vector<8x1xf32>
    %cst_87 = arith.constant dense<0.000000e+00> : vector<8xf32>
    %146 = vector.multi_reduction <add>, %142, %cst_87 [1] : vector<8x8xf32> to vector<8xf32>
    %147 = vector.shape_cast %146 : vector<8xf32> to vector<8x1xf32>
    %148 = arith.addf %145, %147 : vector<8x1xf32>
    %c3_88 = arith.constant 3 : index
    %c0_89 = arith.constant 0 : index
    %c0_90 = arith.constant 0 : index
    %149 = vector.load %arg18[%c3_88, %c0_89, %c0_90] : memref<4x8x1xf32, #tpu.memory_space<vmem>>, vector<1x8x1xf32>
    %150 = vector.shape_cast %149 : vector<1x8x1xf32> to vector<8x1xf32>
    %151 = vector.shape_cast %148 : vector<8x1xf32> to vector<1x8x1xf32>
    tpu.vector_store %arg18[%c3_88, %c0_89, %c0_90], %151 {strides = array<i32>} : memref<4x8x1xf32, #tpu.memory_space<vmem>>, vector<1x8x1xf32>,
    %cst_91 = arith.constant dense<0.000000e+00> : vector<8x8xf32>
    %152 = tpu.matmul %142, %131, %cst_91 {dimension_numbers = #tpu.dot_dimension_numbers<[1], [0], [0], [1], [0, 0, 1, 1], [], []>} : vector<8x8xf32>, vector<8x8xf32>, vector<8x8xf32> -> vector<8x8xf32>
    %c0_92 = arith.constant 0 : index
    %c24_93 = arith.constant 24 : index
    %153 = vector.load %arg16[%c0_92, %c24_93] : memref<8x32xf32, #tpu.memory_space<vmem>>, vector<8x8xf32>
    %154 = vector.broadcast %139 : vector<8x1xf32> to vector<8x8xf32>
    %155 = arith.mulf %154, %153 : vector<8x8xf32>
    %156 = arith.addf %155, %152 : vector<8x8xf32>
    %c0_94 = arith.constant 0 : index
    %c24_95 = arith.constant 24 : index
    %157 = vector.load %arg16[%c0_94, %c24_95] : memref<8x32xf32, #tpu.memory_space<vmem>>, vector<8x8xf32>
    tpu.vector_store %arg16[%c0_94, %c24_95], %156 {strides = array<i32>} : memref<8x32xf32, #tpu.memory_space<vmem>>, vector<8x8xf32>,
    %c3_96 = arith.constant 3 : index
    %c0_97 = arith.constant 0 : index
    %c0_98 = arith.constant 0 : index
    %158 = vector.load %arg17[%c3_96, %c0_97, %c0_98] : memref<4x8x1xf32, #tpu.memory_space<vmem>>, vector<1x8x1xf32>
    %159 = vector.shape_cast %158 : vector<1x8x1xf32> to vector<8x1xf32>
    %160 = vector.shape_cast %137 : vector<8x1xf32> to vector<1x8x1xf32>
    tpu.vector_store %arg17[%c3_96, %c0_97, %c0_98], %160 {strides = array<i32>} : memref<4x8x1xf32, #tpu.memory_space<vmem>>, vector<1x8x1xf32>,
    %c1_i32 = arith.constant 1 : i32
    %161 = arith.cmpi eq, %arg2, %c1_i32 : i32
    %162 = arith.extui %161 : i1 to i32
    %c0_i32_99 = arith.constant 0 : i32
    %163 = arith.cmpi ne, %162, %c0_i32_99 : i32
    scf.if %163 {
      %c0_100 = arith.constant 0 : index
      %c0_101 = arith.constant 0 : index
      %c0_102 = arith.constant 0 : index
      %164 = vector.load %arg18[%c0_100, %c0_101, %c0_102] : memref<4x8x1xf32, #tpu.memory_space<vmem>>, vector<1x8x1xf32>
      %165 = vector.shape_cast %164 : vector<1x8x1xf32> to vector<8x1xf32>
      %166 = tpu.reciprocal %165 {approx = true} : vector<8x1xf32> -> vector<8x1xf32>
      %c0_103 = arith.constant 0 : index
      %c0_104 = arith.constant 0 : index
      %167 = vector.load %arg16[%c0_103, %c0_104] : memref<8x32xf32, #tpu.memory_space<vmem>>, vector<8x8xf32>
      %168 = vector.broadcast %166 : vector<8x1xf32> to vector<8x8xf32>
      %169 = arith.mulf %167, %168 : vector<8x8xf32>
      %c0_105 = arith.constant 0 : index
      %c0_106 = arith.constant 0 : index
      %170 = vector.load %arg16[%c0_105, %c0_106] : memref<8x32xf32, #tpu.memory_space<vmem>>, vector<8x8xf32>
      tpu.vector_store %arg16[%c0_105, %c0_106], %169 {strides = array<i32>} : memref<8x32xf32, #tpu.memory_space<vmem>>, vector<8x8xf32>,
      %c1_107 = arith.constant 1 : index
      %c0_108 = arith.constant 0 : index
      %c0_109 = arith.constant 0 : index
      %171 = vector.load %arg18[%c1_107, %c0_108, %c0_109] : memref<4x8x1xf32, #tpu.memory_space<vmem>>, vector<1x8x1xf32>
      %172 = vector.shape_cast %171 : vector<1x8x1xf32> to vector<8x1xf32>
      %173 = tpu.reciprocal %172 {approx = true} : vector<8x1xf32> -> vector<8x1xf32>
      %c0_110 = arith.constant 0 : index
      %c8_111 = arith.constant 8 : index
      %174 = vector.load %arg16[%c0_110, %c8_111] : memref<8x32xf32, #tpu.memory_space<vmem>>, vector<8x8xf32>
      %175 = vector.broadcast %173 : vector<8x1xf32> to vector<8x8xf32>
      %176 = arith.mulf %174, %175 : vector<8x8xf32>
      %c0_112 = arith.constant 0 : index
      %c8_113 = arith.constant 8 : index
      %177 = vector.load %arg16[%c0_112, %c8_113] : memref<8x32xf32, #tpu.memory_space<vmem>>, vector<8x8xf32>
      tpu.vector_store %arg16[%c0_112, %c8_113], %176 {strides = array<i32>} : memref<8x32xf32, #tpu.memory_space<vmem>>, vector<8x8xf32>,
      %c2_114 = arith.constant 2 : index
      %c0_115 = arith.constant 0 : index
      %c0_116 = arith.constant 0 : index
      %178 = vector.load %arg18[%c2_114, %c0_115, %c0_116] : memref<4x8x1xf32, #tpu.memory_space<vmem>>, vector<1x8x1xf32>
      %179 = vector.shape_cast %178 : vector<1x8x1xf32> to vector<8x1xf32>
      %180 = tpu.reciprocal %179 {approx = true} : vector<8x1xf32> -> vector<8x1xf32>
      %c0_117 = arith.constant 0 : index
      %c16_118 = arith.constant 16 : index
      %181 = vector.load %arg16[%c0_117, %c16_118] : memref<8x32xf32, #tpu.memory_space<vmem>>, vector<8x8xf32>
      %182 = vector.broadcast %180 : vector<8x1xf32> to vector<8x8xf32>
      %183 = arith.mulf %181, %182 : vector<8x8xf32>
      %c0_119 = arith.constant 0 : index
      %c16_120 = arith.constant 16 : index
      %184 = vector.load %arg16[%c0_119, %c16_120] : memref<8x32xf32, #tpu.memory_space<vmem>>, vector<8x8xf32>
      tpu.vector_store %arg16[%c0_119, %c16_120], %183 {strides = array<i32>} : memref<8x32xf32, #tpu.memory_space<vmem>>, vector<8x8xf32>,
      %c3_121 = arith.constant 3 : index
      %c0_122 = arith.constant 0 : index
      %c0_123 = arith.constant 0 : index
      %185 = vector.load %arg18[%c3_121, %c0_122, %c0_123] : memref<4x8x1xf32, #tpu.memory_space<vmem>>, vector<1x8x1xf32>
      %186 = vector.shape_cast %185 : vector<1x8x1xf32> to vector<8x1xf32>
      %187 = tpu.reciprocal %186 {approx = true} : vector<8x1xf32> -> vector<8x1xf32>
      %c0_124 = arith.constant 0 : index
      %c24_125 = arith.constant 24 : index
      %188 = vector.load %arg16[%c0_124, %c24_125] : memref<8x32xf32, #tpu.memory_space<vmem>>, vector<8x8xf32>
      %189 = vector.broadcast %187 : vector<8x1xf32> to vector<8x8xf32>
      %190 = arith.mulf %188, %189 : vector<8x8xf32>
      %c0_126 = arith.constant 0 : index
      %c24_127 = arith.constant 24 : index
      %191 = vector.load %arg16[%c0_126, %c24_127] : memref<8x32xf32, #tpu.memory_space<vmem>>, vector<8x8xf32>
      tpu.vector_store %arg16[%c0_126, %c24_127], %190 {strides = array<i32>} : memref<8x32xf32, #tpu.memory_space<vmem>>, vector<8x8xf32>,
      %c0_128 = arith.constant 0 : index
      %c0_129 = arith.constant 0 : index
      %192 = vector.load %arg16[%c0_128, %c0_129] : memref<8x32xf32, #tpu.memory_space<vmem>>, vector<8x32xf32>
      %c0_130 = arith.constant 0 : index
      %c0_131 = arith.constant 0 : index
      %193 = vector.load %arg12[%c0_130, %c0_131] : memref<32x128xf32, #tpu.memory_space<vmem>>, vector<32x128xf32>
      %cst_132 = arith.constant dense<0.000000e+00> : vector<8x128xf32>
      %194 = tpu.matmul %192, %193, %cst_132 {dimension_numbers = #tpu.dot_dimension_numbers<[1], [0], [0], [1], [0, 0, 1, 1], [], []>} : vector<8x32xf32>, vector<32x128xf32>, vector<8x128xf32> -> vector<8x128xf32>
      %c0_133 = arith.constant 0 : index
      %c0_134 = arith.constant 0 : index
      %195 = vector.load %arg13[%c0_133, %c0_134] : memref<1x128xf32, #tpu.memory_space<vmem>>, vector<1x128xf32>
      %196 = vector.broadcast %195 : vector<1x128xf32> to vector<8x128xf32>
      %197 = arith.addf %194, %196 : vector<8x128xf32>
      %c0_135 = arith.constant 0 : index
      %c0_136 = arith.constant 0 : index
      %c0_137 = arith.constant 0 : index
      %198 = vector.load %arg14[%c0_135, %c0_136, %c0_137] : memref<1x8x128xf32, #tpu.memory_space<vmem>>, vector<1x8x128xf32>
      %199 = vector.shape_cast %198 : vector<1x8x128xf32> to vector<8x128xf32>
      %200 = vector.shape_cast %197 : vector<8x128xf32> to vector<1x8x128xf32>
      tpu.vector_store %arg14[%c0_135, %c0_136, %c0_137], %200 {strides = array<i32>} : memref<1x8x128xf32, #tpu.memory_space<vmem>>, vector<1x8x128xf32>,
    } else {
    }
    return
  }
  func.func @transform_0(%arg0: i32, %arg1: i32, %arg2: i32) -> (i32, i32, i32) {
    %c0_i32 = arith.constant 0 : i32
    %c0_i32_0 = arith.constant 0 : i32
    return %arg0, %arg1, %c0_i32 : i32, i32, i32
  }
  func.func @transform_1(%arg0: i32, %arg1: i32, %arg2: i32) -> (i32, i32, i32) {
    %c0_i32 = arith.constant 0 : i32
    %c0_i32_0 = arith.constant 0 : i32
    return %arg0, %arg2, %c0_i32 : i32, i32, i32
  }
  func.func @transform_2(%arg0: i32, %arg1: i32, %arg2: i32) -> (i32, i32) {
    %c0_i32 = arith.constant 0 : i32
    %c0_i32_0 = arith.constant 0 : i32
    %c0_i32_1 = arith.constant 0 : i32
    return %c0_i32, %c0_i32_0 : i32, i32
  }
  func.func @transform_3(%arg0: i32, %arg1: i32, %arg2: i32) -> (i32, i32) {
    %c0_i32 = arith.constant 0 : i32
    %c0_i32_0 = arith.constant 0 : i32
    %c0_i32_1 = arith.constant 0 : i32
    return %c0_i32, %c0_i32_0 : i32, i32
  }
  func.func @transform_4(%arg0: i32, %arg1: i32, %arg2: i32) -> (i32, i32) {
    %c0_i32 = arith.constant 0 : i32
    %c0_i32_0 = arith.constant 0 : i32
    %c0_i32_1 = arith.constant 0 : i32
    return %c0_i32, %c0_i32_0 : i32, i32
  }
  func.func @transform_5(%arg0: i32, %arg1: i32, %arg2: i32) -> (i32, i32) {
    %c0_i32 = arith.constant 0 : i32
    %c0_i32_0 = arith.constant 0 : i32
    %c0_i32_1 = arith.constant 0 : i32
    return %c0_i32, %c0_i32_0 : i32, i32
  }
  func.func @transform_6(%arg0: i32, %arg1: i32, %arg2: i32) -> (i32, i32) {
    %c0_i32 = arith.constant 0 : i32
    %c0_i32_0 = arith.constant 0 : i32
    %c0_i32_1 = arith.constant 0 : i32
    return %c0_i32, %c0_i32_0 : i32, i32
  }
  func.func @transform_7(%arg0: i32, %arg1: i32, %arg2: i32) -> (i32, i32) {
    %c0_i32 = arith.constant 0 : i32
    %c0_i32_0 = arith.constant 0 : i32
    %c0_i32_1 = arith.constant 0 : i32
    return %c0_i32, %c0_i32_0 : i32, i32
  }
  func.func @transform_8(%arg0: i32, %arg1: i32, %arg2: i32) -> (i32, i32) {
    %c0_i32 = arith.constant 0 : i32
    %c0_i32_0 = arith.constant 0 : i32
    %c0_i32_1 = arith.constant 0 : i32
    return %c0_i32, %c0_i32_0 : i32, i32
  }
  func.func @transform_9(%arg0: i32, %arg1: i32, %arg2: i32) -> (i32, i32) {
    %c0_i32 = arith.constant 0 : i32
    %c0_i32_0 = arith.constant 0 : i32
    %c0_i32_1 = arith.constant 0 : i32
    return %c0_i32, %c0_i32_0 : i32, i32
  }
  func.func @transform_10(%arg0: i32, %arg1: i32, %arg2: i32) -> (i32, i32) {
    %c0_i32 = arith.constant 0 : i32
    %c0_i32_0 = arith.constant 0 : i32
    %c0_i32_1 = arith.constant 0 : i32
    return %c0_i32, %c0_i32_0 : i32, i32
  }
  func.func @transform_11(%arg0: i32, %arg1: i32, %arg2: i32) -> (i32, i32, i32) {
    %c0_i32 = arith.constant 0 : i32
    %c0_i32_0 = arith.constant 0 : i32
    return %arg0, %arg1, %c0_i32 : i32, i32, i32
  }
}

</mosaic_0001>

<llo_original>
// kernel: tpu_custom_call.1
$region0: #{tpu_custom_call.1}
  #allocation0 [shape = 'u32[]', space=smem, size = 0x4, offset = 0x4, fixed_abs, tag = 'smem constant byte address 0x4 - core index']
  #allocation1 [shape = 'u32[144,128]{1,0:T(1,128)}', space=vmem, size = 0x12000, scoped, tag = 'internal scratch']
  #allocation2 [shape = 'f32[8,32]{1,0:T(8,128)}', space=vmem, size = 0x1000, scoped, tag = 'scratch operand']
  #allocation3 [shape = 'f32[8,32]{1,0:T(8,128)}', space=vmem, size = 0x1000, scoped, tag = 'scratch operand']
  #allocation4 [shape = 'f32[4,8,1]{2,1,0:T(8,128)}', space=vmem, size = 0x4000, scoped, tag = 'scratch operand']
  #allocation5 [shape = 'f32[4,8,1]{2,1,0:T(8,128)}', space=vmem, size = 0x4000, scoped, tag = 'scratch operand']
  %s0 = inlined_call_operand.hbm [shape: f32[2,8,32], index: 0, kind: input, shape index: {}]
  %s1 = inlined_call_operand.hbm [shape: f32[2,16,16], index: 1, kind: input, shape index: {}]
  %s2 = inlined_call_operand.vmem [shape: f32[1,32], index: 2, kind: input, shape index: {}]
  %s3 = inlined_call_operand.vmem [shape: f32[1,32], index: 3, kind: input, shape index: {}]
  %s4 = inlined_call_operand.vmem [shape: f32[1,16], index: 4, kind: input, shape index: {}]
  %s5 = inlined_call_operand.vmem [shape: f32[1,16], index: 5, kind: input, shape index: {}]
  %s6 = inlined_call_operand.hbm [shape: f32[32,32], index: 6, kind: input, shape index: {}]
  %s7 = inlined_call_operand.hbm [shape: f32[16,32], index: 7, kind: input, shape index: {}]
  %s8 = inlined_call_operand.hbm [shape: f32[16,32], index: 8, kind: input, shape index: {}]
  %s9 = inlined_call_operand.hbm [shape: f32[32,128], index: 9, kind: input, shape index: {}]
  %s10 = inlined_call_operand.vmem [shape: f32[1,128], index: 10, kind: input, shape index: {}]
  %s11 = inlined_call_operand.hbm [shape: f32[2,8,128], index: 11, kind: output, shape index: {}]
  %s12 = sld [smem:[#allocation0]]
  $region109: #{tpu_custom_call.1} parent=0
    _
  %s14 = ssub.s32 1, %s12
  %s15 = scalar_select 0, %s14, %s12
  $region1: #{tpu_custom_call.1} parent=0
    #allocation6 [shape = 'u8[8192]{0}', space=vmem, size = 0x2000, scoped, tag = 'input window, operand 0']
    #allocation7 [shape = 's32[2]{0}', space=sflag, size = 0x8, scoped, tag = 'scoped memory for tpu_custom_call.1']
    #allocation8 [shape = 's32[2]{0}', space=sflag, size = 0x8, scoped, tag = 'scoped memory for tpu_custom_call.1']
    #allocation9 [shape = 'u8[8192]{0}', space=vmem, size = 0x2000, scoped, tag = 'input window, operand 1']
    #allocation10 [shape = 's32[2]{0}', space=sflag, size = 0x8, scoped, tag = 'scoped memory for tpu_custom_call.1']
    #allocation11 [shape = 'u8[16384]{0}', space=vmem, size = 0x4000, scoped, tag = 'input window, operand 6, single buffered']
    #allocation12 [shape = 'u8[8192]{0}', space=vmem, size = 0x2000, scoped, tag = 'input window, operand 7, single buffered']
    #allocation13 [shape = 's32[1]{0}', space=sflag, size = 0x4, scoped, tag = 'scoped memory for tpu_custom_call.1']
    #allocation14 [shape = 'u8[8192]{0}', space=vmem, size = 0x2000, scoped, tag = 'input window, operand 8, single buffered']
    #allocation15 [shape = 'u8[16384]{0}', space=vmem, size = 0x4000, scoped, tag = 'input window, operand 9, single buffered']
    #allocation16 [shape = 's32[1]{0}', space=sflag, size = 0x4, scoped, tag = 'scoped memory for tpu_custom_call.1']
    #allocation17 [shape = 'u8[8192]{0}', space=vmem, size = 0x2000, scoped, tag = 'output window, operand 0']
    %16 = vsyncpa [#allocation7], 0
    %s17 = scalar_lea.sflag [#allocation7], 1
    %18 = vsyncpa %s17, 0
    %19 = vsyncpa [#allocation10], 0
    %s20 = scalar_lea.sflag [#allocation10], 1
    %21 = vsyncpa %s20, 0
    %22 = vsyncpa [#allocation13], 0
    %23 = vsyncpa [#allocation16], 0
    %24 = vsyncpa [#allocation8], 0
    %s25 = scalar_lea.sflag [#allocation8], 1
    %26 = vsyncpa %s25, 0
    loop: start=0, step=1, limit=6
    $region2: #{tpu_custom_call.1} parent=1 // loop_pre_header
      _
    $region3: #{tpu_custom_call.1} parent=1 // loop_header
      %s28 = sphi 0, %s32
      %p29 = scmp.ge.s32.totalorder %s28, 6
      %s35 = sphi 0, %s54
      %s36 = sphi 0, %s50
      %s37 = sphi 0, %s46
      %s38 = sphi 0, %s35
      %s39 = sphi 0, %s36
      %s40 = sphi 0, %s37
      %s41 = sphi 0, %s38
      %s42 = sphi 0, %s39
      %s43 = sphi 0, %s40
      %s59 = sphi 0, %s61
      %s62 = sphi 0, %s59
      %s63 = sphi 0, %s62
      %s79 = sphi 0, %s63
      %s87 = sphi 0, %s89
      %s90 = sphi 0, %s87
      %s91 = sphi 0, %s90
      %s107 = sphi 0, %s91
      %s111 = sphi 0, %s111
      %s113 = sphi 0, %s111
      %s114 = sphi 0, %s113
      %s128 = sphi 0, %s114
      %s132 = sphi 0, %s132
      %s134 = sphi 0, %s132
      %s135 = sphi 0, %s134
      %s149 = sphi 0, %s135
      %s153 = sphi 0, %s153
      %s155 = sphi 0, %s153
      %s156 = sphi 0, %s155
      %s170 = sphi 0, %s156
      %s174 = sphi 0, %s174
      %s176 = sphi 0, %s174
      %s177 = sphi 0, %s176
      %s191 = sphi 0, %s177
      %s195 = sphi 0, %s195
      %s197 = sphi 0, %s195
      %s198 = sphi 0, %s197
      %s212 = sphi 0, %s198
      %s216 = sphi 0, %s216
      %s218 = sphi 0, %s216
      %s219 = sphi 0, %s218
      %s233 = sphi 0, %s219
      %s237 = sphi 0, %s237
      %s239 = sphi 0, %s237
      %s240 = sphi 0, %s239
      %s254 = sphi 0, %s240
      %s258 = sphi 0, %s258
      %s260 = sphi 0, %s258
      %s261 = sphi 0, %s260
      %s275 = sphi 0, %s261
      %s279 = sphi 0, %s279
      %s281 = sphi 0, %s279
      %s282 = sphi 0, %s281
      %s296 = sphi 0, %s282
      %s304 = sphi 0, %s306
      %s307 = sphi 0, %s304
      %s308 = sphi 0, %s307
      %s324 = sphi 0, %s308
    $region4: #{tpu_custom_call.1} parent=1 // loop_header_branch
      %31 = sbr.rel (%p29) target = $region8
    $region5: #{tpu_custom_call.1} parent=1 // loop_body
      %s33 = ssub.s32 %s28, 1
      %s34 = ssub.s32 %s28, 2
      %s44 = sadd.s32 1, %s37
      %p45 = scmp.ge.s32.totalorder %s44, 2
      %s46 = scalar_select %p45, 0, %s44
      %s47 = sadd.s32 1, %s36
      %s48 = scalar_select %p45, %s47, %s36
      %p49 = scmp.ge.s32.totalorder %s48, 1
      %s50 = scalar_select %p49, 0, %s48
      %s51 = sadd.s32 1, %s35
      %s52 = scalar_select %p49, %s51, %s35
      %p53 = scmp.ge.s32.totalorder %s52, 2
      %s54 = scalar_select %p53, 0, %s52
      %s55 = ssub.s32 %s35, %s54
      %s56 = ssub.s32 %s36, %s50
      %s57 = sor.u32 %s55, %s56
      %p58 = scmp.eq.s32.totalorder %s57, 0
      %s60 = sadd.s32 %s59, 1
      %s61 = scalar_select %p58, %s59, %s60
      %p64 = pneg %p58
      %p65 = scmp.eq.s32.totalorder %s28, 3
      %p66 = por %p64, %p65
      %p67 = scmp.ne.s32.totalorder %s59, %s62
      %p68 = scmp.eq.s32.totalorder %s28, 0
      %p69 = por %p67, %p68
      %p70 = scmp.ne.s32.totalorder %s59, %s62
      %p71 = scmp.eq.s32.totalorder %s33, 3
      %p72 = por %p70, %p71
      %p73 = scmp.ne.s32.totalorder %s62, %s63
      %p74 = scmp.eq.s32.totalorder %s33, 0
      %p75 = por %p73, %p74
      %p76 = scmp.ne.s32.totalorder %s62, %s63
      %p77 = scmp.eq.s32.totalorder %s34, 3
      %p78 = por %p76, %p77
      %p80 = scmp.ne.s32.totalorder %s63, %s79
      %p81 = scmp.eq.s32.totalorder %s34, 0
      %p82 = por %p80, %p81
      %s83 = ssub.s32 %s35, %s54
      %s84 = ssub.s32 %s37, %s46
      %s85 = sor.u32 %s83, %s84
      %p86 = scmp.eq.s32.totalorder %s85, 0
      %s88 = sadd.s32 %s87, 1
      %s89 = scalar_select %p86, %s87, %s88
      %p92 = pneg %p86
      %p93 = scmp.eq.s32.totalorder %s28, 3
      %p94 = por %p92, %p93
      %p95 = scmp.ne.s32.totalorder %s87, %s90
      %p96 = scmp.eq.s32.totalorder %s28, 0
      %p97 = por %p95, %p96
      %p98 = scmp.ne.s32.totalorder %s87, %s90
      %p99 = scmp.eq.s32.totalorder %s33, 3
      %p100 = por %p98, %p99
      %p101 = scmp.ne.s32.totalorder %s90, %s91
      %p102 = scmp.eq.s32.totalorder %s33, 0
      %p103 = por %p101, %p102
      %p104 = scmp.ne.s32.totalorder %s90, %s91
      %p105 = scmp.eq.s32.totalorder %s34, 3
      %p106 = por %p104, %p105
      %p108 = scmp.ne.s32.totalorder %s91, %s107
      %p109 = scmp.eq.s32.totalorder %s34, 0
      %p110 = por %p108, %p109
      %s112 = sadd.s32 %s111, 1
      %p115 = scmp.eq.s32.totalorder %s28, 3
      %p116 = scmp.ne.s32.totalorder %s111, %s113
      %p117 = scmp.eq.s32.totalorder %s28, 0
      %p118 = por %p116, %p117
      %p119 = scmp.ne.s32.totalorder %s111, %s113
      %p120 = scmp.eq.s32.totalorder %s33, 3
      %p121 = por %p119, %p120
      %p122 = scmp.ne.s32.totalorder %s113, %s114
      %p123 = scmp.eq.s32.totalorder %s33, 0
      %p124 = por %p122, %p123
      %p125 = scmp.ne.s32.totalorder %s113, %s114
      %p126 = scmp.eq.s32.totalorder %s34, 3
      %p127 = por %p125, %p126
      %p129 = scmp.ne.s32.totalorder %s114, %s128
      %p130 = scmp.eq.s32.totalorder %s34, 0
      %p131 = por %p129, %p130
      %s133 = sadd.s32 %s132, 1
      %p136 = scmp.eq.s32.totalorder %s28, 3
      %p137 = scmp.ne.s32.totalorder %s132, %s134
      %p138 = scmp.eq.s32.totalorder %s28, 0
      %p139 = por %p137, %p138
      %p140 = scmp.ne.s32.totalorder %s132, %s134
      %p141 = scmp.eq.s32.totalorder %s33, 3
      %p142 = por %p140, %p141
      %p143 = scmp.ne.s32.totalorder %s134, %s135
      %p144 = scmp.eq.s32.totalorder %s33, 0
      %p145 = por %p143, %p144
      %p146 = scmp.ne.s32.totalorder %s134, %s135
      %p147 = scmp.eq.s32.totalorder %s34, 3
      %p148 = por %p146, %p147
      %p150 = scmp.ne.s32.totalorder %s135, %s149
      %p151 = scmp.eq.s32.totalorder %s34, 0
      %p152 = por %p150, %p151
      %s154 = sadd.s32 %s153, 1
      %p157 = scmp.eq.s32.totalorder %s28, 3
      %p158 = scmp.ne.s32.totalorder %s153, %s155
      %p159 = scmp.eq.s32.totalorder %s28, 0
      %p160 = por %p158, %p159
      %p161 = scmp.ne.s32.totalorder %s153, %s155
      %p162 = scmp.eq.s32.totalorder %s33, 3
      %p163 = por %p161, %p162
      %p164 = scmp.ne.s32.totalorder %s155, %s156
      %p165 = scmp.eq.s32.totalorder %s33, 0
      %p166 = por %p164, %p165
      %p167 = scmp.ne.s32.totalorder %s155, %s156
      %p168 = scmp.eq.s32.totalorder %s34, 3
      %p169 = por %p167, %p168
      %p171 = scmp.ne.s32.totalorder %s156, %s170
      %p172 = scmp.eq.s32.totalorder %s34, 0
      %p173 = por %p171, %p172
      %s175 = sadd.s32 %s174, 1
      %p178 = scmp.eq.s32.totalorder %s28, 3
      %p179 = scmp.ne.s32.totalorder %s174, %s176
      %p180 = scmp.eq.s32.totalorder %s28, 0
      %p181 = por %p179, %p180
      %p182 = scmp.ne.s32.totalorder %s174, %s176
      %p183 = scmp.eq.s32.totalorder %s33, 3
      %p184 = por %p182, %p183
      %p185 = scmp.ne.s32.totalorder %s176, %s177
      %p186 = scmp.eq.s32.totalorder %s33, 0
      %p187 = por %p185, %p186
      %p188 = scmp.ne.s32.totalorder %s176, %s177
      %p189 = scmp.eq.s32.totalorder %s34, 3
      %p190 = por %p188, %p189
      %p192 = scmp.ne.s32.totalorder %s177, %s191
      %p193 = scmp.eq.s32.totalorder %s34, 0
      %p194 = por %p192, %p193
      %s196 = sadd.s32 %s195, 1
      %p199 = scmp.eq.s32.totalorder %s28, 3
      %p200 = scmp.ne.s32.totalorder %s195, %s197
      %p201 = scmp.eq.s32.totalorder %s28, 0
      %p202 = por %p200, %p201
      %p203 = scmp.ne.s32.totalorder %s195, %s197
      %p204 = scmp.eq.s32.totalorder %s33, 3
      %p205 = por %p203, %p204
      %p206 = scmp.ne.s32.totalorder %s197, %s198
      %p207 = scmp.eq.s32.totalorder %s33, 0
      %p208 = por %p206, %p207
      %p209 = scmp.ne.s32.totalorder %s197, %s198
      %p210 = scmp.eq.s32.totalorder %s34, 3
      %p211 = por %p209, %p210
      %p213 = scmp.ne.s32.totalorder %s198, %s212
      %p214 = scmp.eq.s32.totalorder %s34, 0
      %p215 = por %p213, %p214
      %s217 = sadd.s32 %s216, 1
      %p220 = scmp.eq.s32.totalorder %s28, 3
      %p221 = scmp.ne.s32.totalorder %s216, %s218
      %p222 = scmp.eq.s32.totalorder %s28, 0
      %p223 = por %p221, %p222
      %p224 = scmp.ne.s32.totalorder %s216, %s218
      %p225 = scmp.eq.s32.totalorder %s33, 3
      %p226 = por %p224, %p225
      %p227 = scmp.ne.s32.totalorder %s218, %s219
      %p228 = scmp.eq.s32.totalorder %s33, 0
      %p229 = por %p227, %p228
      %p230 = scmp.ne.s32.totalorder %s218, %s219
      %p231 = scmp.eq.s32.totalorder %s34, 3
      %p232 = por %p230, %p231
      %p234 = scmp.ne.s32.totalorder %s219, %s233
      %p235 = scmp.eq.s32.totalorder %s34, 0
      %p236 = por %p234, %p235
      %s238 = sadd.s32 %s237, 1
      %p241 = scmp.eq.s32.totalorder %s28, 3
      %p242 = scmp.ne.s32.totalorder %s237, %s239
      %p243 = scmp.eq.s32.totalorder %s28, 0
      %p244 = por %p242, %p243
      %p245 = scmp.ne.s32.totalorder %s237, %s239
      %p246 = scmp.eq.s32.totalorder %s33, 3
      %p247 = por %p245, %p246
      %p248 = scmp.ne.s32.totalorder %s239, %s240
      %p249 = scmp.eq.s32.totalorder %s33, 0
      %p250 = por %p248, %p249
      %p251 = scmp.ne.s32.totalorder %s239, %s240
      %p252 = scmp.eq.s32.totalorder %s34, 3
      %p253 = por %p251, %p252
      %p255 = scmp.ne.s32.totalorder %s240, %s254
      %p256 = scmp.eq.s32.totalorder %s34, 0
      %p257 = por %p255, %p256
      %s259 = sadd.s32 %s258, 1
      %p262 = scmp.eq.s32.totalorder %s28, 3
      %p263 = scmp.ne.s32.totalorder %s258, %s260
      %p264 = scmp.eq.s32.totalorder %s28, 0
      %p265 = por %p263, %p264
      %p266 = scmp.ne.s32.totalorder %s258, %s260
      %p267 = scmp.eq.s32.totalorder %s33, 3
      %p268 = por %p266, %p267
      %p269 = scmp.ne.s32.totalorder %s260, %s261
      %p270 = scmp.eq.s32.totalorder %s33, 0
      %p271 = por %p269, %p270
      %p272 = scmp.ne.s32.totalorder %s260, %s261
      %p273 = scmp.eq.s32.totalorder %s34, 3
      %p274 = por %p272, %p273
      %p276 = scmp.ne.s32.totalorder %s261, %s275
      %p277 = scmp.eq.s32.totalorder %s34, 0
      %p278 = por %p276, %p277
      %s280 = sadd.s32 %s279, 1
      %p283 = scmp.eq.s32.totalorder %s28, 3
      %p284 = scmp.ne.s32.totalorder %s279, %s281
      %p285 = scmp.eq.s32.totalorder %s28, 0
      %p286 = por %p284, %p285
      %p287 = scmp.ne.s32.totalorder %s279, %s281
      %p288 = scmp.eq.s32.totalorder %s33, 3
      %p289 = por %p287, %p288
      %p290 = scmp.ne.s32.totalorder %s281, %s282
      %p291 = scmp.eq.s32.totalorder %s33, 0
      %p292 = por %p290, %p291
      %p293 = scmp.ne.s32.totalorder %s281, %s282
      %p294 = scmp.eq.s32.totalorder %s34, 3
      %p295 = por %p293, %p294
      %p297 = scmp.ne.s32.totalorder %s282, %s296
      %p298 = scmp.eq.s32.totalorder %s34, 0
      %p299 = por %p297, %p298
      %s300 = ssub.s32 %s35, %s54
      %s301 = ssub.s32 %s36, %s50
      %s302 = sor.u32 %s300, %s301
      %p303 = scmp.eq.s32.totalorder %s302, 0
      %s305 = sadd.s32 %s304, 1
      %s306 = scalar_select %p303, %s304, %s305
      %p309 = pneg %p303
      %p310 = scmp.eq.s32.totalorder %s28, 3
      %p311 = por %p309, %p310
      %p312 = scmp.ne.s32.totalorder %s304, %s307
      %p313 = scmp.eq.s32.totalorder %s28, 0
      %p314 = por %p312, %p313
      %p315 = scmp.ne.s32.totalorder %s304, %s307
      %p316 = scmp.eq.s32.totalorder %s33, 3
      %p317 = por %p315, %p316
      %p318 = scmp.ne.s32.totalorder %s307, %s308
      %p319 = scmp.eq.s32.totalorder %s33, 0
      %p320 = por %p318, %p319
      %p321 = scmp.ne.s32.totalorder %s307, %s308
      %p322 = scmp.eq.s32.totalorder %s34, 3
      %p323 = por %p321, %p322
      %p325 = scmp.ne.s32.totalorder %s308, %s324
      %p326 = scmp.eq.s32.totalorder %s34, 0
      %p327 = por %p325, %p326
      %p328 = scmp.le.s32.totalorder 1, %s28
      %p329 = scmp.lt.s32.totalorder %s28, 5
      %p330 = pnand %p328, %p329
      %p331 = pneg %p330
      // Predicated region
      $region9: #{tpu_custom_call.1} parent=5 // pred_check
        _
      $region10: #{tpu_custom_call.1} parent=5 // pred_check_branch
        %333 = sbr.rel (%p330) target = $region12
      $region11: #{tpu_custom_call.1} parent=5 // pred_region
        %s334 = ssub.s32 %s28, 1
        // Predicated region
        $region13: #{tpu_custom_call.1} parent=11 // pred_check
          %p335 = pneg %p124
        $region14: #{tpu_custom_call.1} parent=11 // pred_check_branch
          %337 = sbr.rel (%p335) target = $region16
        $region15: #{tpu_custom_call.1} parent=11 // pred_region
          _
        $region16: #{tpu_custom_call.1} parent=11 // pred_fallthru
          _
        // Predicated region
        $region17: #{tpu_custom_call.1} parent=11 // pred_check
          %p338 = pneg %p145
        $region18: #{tpu_custom_call.1} parent=11 // pred_check_branch
          %340 = sbr.rel (%p338) target = $region20
        $region19: #{tpu_custom_call.1} parent=11 // pred_region
          _
        $region20: #{tpu_custom_call.1} parent=11 // pred_fallthru
          _
        // Predicated region
        $region21: #{tpu_custom_call.1} parent=11 // pred_check
          %p341 = pneg %p166
        $region22: #{tpu_custom_call.1} parent=11 // pred_check_branch
          %343 = sbr.rel (%p341) target = $region24
        $region23: #{tpu_custom_call.1} parent=11 // pred_region
          _
        $region24: #{tpu_custom_call.1} parent=11 // pred_fallthru
          _
        // Predicated region
        $region25: #{tpu_custom_call.1} parent=11 // pred_check
          %p344 = pneg %p187
        $region26: #{tpu_custom_call.1} parent=11 // pred_check_branch
          %346 = sbr.rel (%p344) target = $region28
        $region27: #{tpu_custom_call.1} parent=11 // pred_region
          _
        $region28: #{tpu_custom_call.1} parent=11 // pred_fallthru
          _
        // Predicated region
        $region29: #{tpu_custom_call.1} parent=11 // pred_check
          %p347 = pneg %p208
        $region30: #{tpu_custom_call.1} parent=11 // pred_check_branch
          %349 = sbr.rel (%p347) target = $region32
        $region31: #{tpu_custom_call.1} parent=11 // pred_region
          %s351 = ssub.s32 512, 512
          %352 = vsyncadd [#allocation10], %s351
          %s353 = sshll.u32 [#allocation11], 4
          %s354 = int_to_ptr.vmem [resolvable:$true] %s353
          %359 = dma.hbm_to_vmem [thread:$0]  %s6, 512, %s354, [#allocation10], 128, 128, 8
        $region32: #{tpu_custom_call.1} parent=11 // pred_fallthru
          _
        // Predicated region
        $region33: #{tpu_custom_call.1} parent=11 // pred_check
          %p360 = pneg %p229
        $region34: #{tpu_custom_call.1} parent=11 // pred_check_branch
          %362 = sbr.rel (%p360) target = $region36
        $region35: #{tpu_custom_call.1} parent=11 // pred_region
          %s364 = ssub.s32 256, 256
          %365 = vsyncadd [#allocation13], %s364
          %s366 = sshll.u32 [#allocation12], 4
          %s367 = int_to_ptr.vmem [resolvable:$true] %s366
          %372 = dma.hbm_to_vmem [thread:$0]  %s7, 256, %s367, [#allocation13], 128, 128, 8
        $region36: #{tpu_custom_call.1} parent=11 // pred_fallthru
          _
        // Predicated region
        $region37: #{tpu_custom_call.1} parent=11 // pred_check
          %p373 = pneg %p250
        $region38: #{tpu_custom_call.1} parent=11 // pred_check_branch
          %375 = sbr.rel (%p373) target = $region40
        $region39: #{tpu_custom_call.1} parent=11 // pred_region
          %s377 = ssub.s32 256, 256
          %378 = vsyncadd [#allocation13], %s377
          %s379 = sshll.u32 [#allocation14], 4
          %s380 = int_to_ptr.vmem [resolvable:$true] %s379
          %385 = dma.hbm_to_vmem [thread:$0]  %s8, 256, %s380, [#allocation13], 128, 128, 8
        $region40: #{tpu_custom_call.1} parent=11 // pred_fallthru
          _
        // Predicated region
        $region41: #{tpu_custom_call.1} parent=11 // pred_check
          %p386 = pneg %p271
        $region42: #{tpu_custom_call.1} parent=11 // pred_check_branch
          %388 = sbr.rel (%p386) target = $region44
        $region43: #{tpu_custom_call.1} parent=11 // pred_region
          %s390 = ssub.s32 512, 512
          %391 = vsyncadd [#allocation16], %s390
          %s392 = sshll.u32 [#allocation15], 4
          %s393 = int_to_ptr.vmem [resolvable:$true] %s392
          %398 = dma.hbm_to_vmem [thread:$0]  %s9, 512, %s393, [#allocation16], 128, 128, 8
        $region44: #{tpu_custom_call.1} parent=11 // pred_fallthru
          _
        // Predicated region
        $region45: #{tpu_custom_call.1} parent=11 // pred_check
          %p399 = pneg %p292
        $region46: #{tpu_custom_call.1} parent=11 // pred_check_branch
          %401 = sbr.rel (%p399) target = $region48
        $region47: #{tpu_custom_call.1} parent=11 // pred_region
          _
        $region48: #{tpu_custom_call.1} parent=11 // pred_fallthru
          _
      $region12: #{tpu_custom_call.1} parent=5 // pred_fallthru
        _
      %p402 = scmp.lt.s32.totalorder %s28, 4
      // Predicated region
      $region49: #{tpu_custom_call.1} parent=5 // pred_check
        %p403 = pneg %p402
      $region50: #{tpu_custom_call.1} parent=5 // pred_check_branch
        %405 = sbr.rel (%p403) target = $region52
      $region51: #{tpu_custom_call.1} parent=5 // pred_region
        // Predicated region
        $region53: #{tpu_custom_call.1} parent=51 // pred_check
          %p406 = pneg %p69
        $region54: #{tpu_custom_call.1} parent=51 // pred_check_branch
          %408 = sbr.rel (%p406) target = $region56
        $region55: #{tpu_custom_call.1} parent=51 // pred_region
          %s409 = sand.u32 %s59, 1
          %s410 = scalar_lea.sflag [#allocation7], %s409
          %s411 = sand.u32 %s59, 1
          %s412 = smul.addr %s411, 8
          %s413 = scalar_lea.vmem [#allocation6], %s412
          %s415 = ssub.s32 128, 128
          %416 = vsyncadd %s410, %s415
          %s417 = sadd.s32 %s36, %s35
          %s418 = smul.addr %s417, 128
          %s419 = scalar_lea.hbm %s0, %s418
          %s421 = sshll.u32 %s413, 4
          %s422 = int_to_ptr.vmem [resolvable:$true] %s421
          %424 = dma.hbm_to_vmem [thread:$0]  %s419, 128, %s422, %s410
        $region56: #{tpu_custom_call.1} parent=51 // pred_fallthru
          _
        // Predicated region
        $region57: #{tpu_custom_call.1} parent=51 // pred_check
          %p425 = pneg %p97
        $region58: #{tpu_custom_call.1} parent=51 // pred_check_branch
          %427 = sbr.rel (%p425) target = $region60
        $region59: #{tpu_custom_call.1} parent=51 // pred_region
          %s428 = sand.u32 %s28, 1
          %s429 = scalar_lea.sflag [#allocation10], %s428
          %s430 = sand.u32 %s87, 1
          %s431 = smul.addr %s430, 8
          %s432 = scalar_lea.vmem [#allocation9], %s431
          %s434 = ssub.s32 128, 128
          %435 = vsyncadd %s429, %s434
          %s436 = smul.addr %s35, 2
          %s437 = sadd.s32 %s37, %s436
          %s438 = smul.addr %s437, 128
          %s439 = scalar_lea.hbm %s1, %s438
          %s441 = sshll.u32 %s432, 4
          %s442 = int_to_ptr.vmem [resolvable:$true] %s441
          %444 = dma.hbm_to_vmem [thread:$0]  %s439, 128, %s442, %s429
        $region60: #{tpu_custom_call.1} parent=51 // pred_fallthru
          _
      $region52: #{tpu_custom_call.1} parent=5 // pred_fallthru
        _
      %p445 = scmp.le.s32.totalorder 1, %s28
      %p446 = scmp.lt.s32.totalorder %s28, 5
      %p447 = pnand %p445, %p446
      %p448 = pneg %p447
      // Predicated region
      $region61: #{tpu_custom_call.1} parent=5 // pred_check
        _
      $region62: #{tpu_custom_call.1} parent=5 // pred_check_branch
        %450 = sbr.rel (%p447) target = $region64
      $region63: #{tpu_custom_call.1} parent=5 // pred_region
        %s451 = ssub.s32 %s28, 1
        %s452 = sand.u32 %s62, 1
        %s453 = scalar_lea.sflag [#allocation7], %s452
        %s454 = sand.u32 %s62, 1
        %s455 = smul.addr %s454, 8
        %s456 = scalar_lea.vmem [#allocation6], %s455
        // Predicated region
        $region65: #{tpu_custom_call.1} parent=63 // pred_check
          %p457 = pneg %p75
        $region66: #{tpu_custom_call.1} parent=63 // pred_check_branch
          %459 = sbr.rel (%p457) target = $region68
        $region67: #{tpu_custom_call.1} parent=63 // pred_region
          %460 = dma.done %s453, 128
        $region68: #{tpu_custom_call.1} parent=63 // pred_fallthru
          _
        %s461 = sand.u32 %s33, 1
        %s462 = scalar_lea.sflag [#allocation10], %s461
        %s463 = sand.u32 %s90, 1
        %s464 = smul.addr %s463, 8
        %s465 = scalar_lea.vmem [#allocation9], %s464
        // Predicated region
        $region69: #{tpu_custom_call.1} parent=63 // pred_check
          %p466 = pneg %p103
        $region70: #{tpu_custom_call.1} parent=63 // pred_check_branch
          %468 = sbr.rel (%p466) target = $region72
        $region71: #{tpu_custom_call.1} parent=63 // pred_region
          %469 = dma.done %s462, 128
        $region72: #{tpu_custom_call.1} parent=63 // pred_fallthru
          _
        // Predicated region
        $region73: #{tpu_custom_call.1} parent=63 // pred_check
          %p470 = pneg %p208
        $region74: #{tpu_custom_call.1} parent=63 // pred_check_branch
          %472 = sbr.rel (%p470) target = $region76
        $region75: #{tpu_custom_call.1} parent=63 // pred_region
          %473 = dma.done [#allocation10], 512
        $region76: #{tpu_custom_call.1} parent=63 // pred_fallthru
          _
        // Predicated region
        $region77: #{tpu_custom_call.1} parent=63 // pred_check
          %p474 = pneg %p229
        $region78: #{tpu_custom_call.1} parent=63 // pred_check_branch
          %476 = sbr.rel (%p474) target = $region80
        $region79: #{tpu_custom_call.1} parent=63 // pred_region
          %477 = dma.done [#allocation13], 256
        $region80: #{tpu_custom_call.1} parent=63 // pred_fallthru
          _
        // Predicated region
        $region81: #{tpu_custom_call.1} parent=63 // pred_check
          %p478 = pneg %p250
        $region82: #{tpu_custom_call.1} parent=63 // pred_check_branch
          %480 = sbr.rel (%p478) target = $region84
        $region83: #{tpu_custom_call.1} parent=63 // pred_region
          %481 = dma.done [#allocation13], 256
        $region84: #{tpu_custom_call.1} parent=63 // pred_fallthru
          _
        // Predicated region
        $region85: #{tpu_custom_call.1} parent=63 // pred_check
          %p482 = pneg %p271
        $region86: #{tpu_custom_call.1} parent=63 // pred_check_branch
          %484 = sbr.rel (%p482) target = $region88
        $region87: #{tpu_custom_call.1} parent=63 // pred_region
          %485 = dma.done [#allocation16], 512
        $region88: #{tpu_custom_call.1} parent=63 // pred_fallthru
          _
        %s486 = sand.u32 %s62, 1
        %s487 = scalar_lea.sflag [#allocation7], %s486
        %s488 = sand.u32 %s62, 1
        %s489 = smul.addr %s488, 8
        %s490 = scalar_lea.vmem [#allocation6], %s489
        %p491 = pneg %p75
        %p492 = pneg %p72
        %s493 = sand.u32 %s33, 1
        %s494 = scalar_lea.sflag [#allocation10], %s493
        %s495 = sand.u32 %s90, 1
        %s496 = smul.addr %s495, 8
        %s497 = scalar_lea.vmem [#allocation9], %s496
        %p498 = pneg %p103
        %p499 = pneg %p100
        %p500 = pneg %p124
        %p501 = pneg %p121
        %p502 = pneg %p145
        %p503 = pneg %p142
        %p504 = pneg %p166
        %p505 = pneg %p163
        %p506 = pneg %p187
        %p507 = pneg %p184
        %p508 = pneg %p208
        %p509 = pneg %p205
        %p510 = pneg %p229
        %p511 = pneg %p226
        %p512 = pneg %p250
        %p513 = pneg %p247
        %p514 = pneg %p271
        %p515 = pneg %p268
        %p516 = pneg %p292
        %p517 = pneg %p289
        %p518 = pneg %p320
        %p519 = pneg %p317
        %s520 = sand.u32 %s307, 1
        %s521 = scalar_lea.sflag [#allocation8], %s520
        %s522 = sand.u32 %s307, 1
        %s523 = smul.addr %s522, 8
        %s524 = scalar_lea.vmem [#allocation17], %s523
        %p525 = scmp.eq.s32.totalorder %s40, 0
        // Predicated region
        $region89: #{tpu_custom_call.1} parent=63 // pred_check
          %p526 = pneg %p525
        $region90: #{tpu_custom_call.1} parent=63 // pred_check_branch
          %528 = sbr.rel (%p526) target = $region92
        $region91: #{tpu_custom_call.1} parent=63 // pred_region
          %v529 = vld [vmem:[%s456] sm:$0xff]
          %v530 = vld [vmem:[%s2] sm:$0x1]
          %v531 = vld [vmem:[%s3] sm:$0x1]
          %vm532 = vcmask 261120
          %v533 = vsel %vm532, %v529, 0.0
          %534 = vadd.xlane.f32.xlu0 %v533
          %v535 = vpop.xlane.xlu0 %534
          %v536 = vrcp.pop 32.0
          %v537 = vmul.f32 %v535, %v536
          %v538 = vsub.f32 %v529, %v537
          %v539 = vmul.f32 %v538, %v538
          %v540 = vsel %vm532, %v539, 0.0
          %541 = vadd.xlane.f32.xlu0 %v540
          %v542 = vpop.xlane.xlu0 %541
          %v543 = vmul.f32 %v542, %v536
          %v544 = vadd.f32 %v543, 1e-05
          %v545 = vrsqrt.pop %v544
          %v546 = vmul.f32 %v538, %v545
          %v548 = vlaneseq
          %v549 = vshrl.u32 %v548, 7
          %v550 = vsub.s32 0, %v549
          %v551 = vrot.slane %v530, %v550
          %v553 = vmul.f32 %v546, %v551
          %v555 = vlaneseq
          %v556 = vshrl.u32 %v555, 7
          %v557 = vsub.s32 0, %v556
          %v558 = vrot.slane %v531, %v557
          %v560 = vadd.f32 %v553, %v558
          %v561 = vld [vmem:[#allocation11] sm:$0xff]
          %v562 = vld [vmem:[#allocation11 + $0x8] sm:$0xff]
          %v563 = vld [vmem:[#allocation11 + $0x10] sm:$0xff]
          %v564 = vld [vmem:[#allocation11 + $0x18] sm:$0xff]
          %v566 = vsel %vm532, %v560, 0
          %568 = vmatprep.subr.mxu0 0.0
          %569 = vmatpush1.msra.mxu0 0.0
          %570 = vmatprep.subr.mxu0 0.0
          %571 = vmatpush1.msra.mxu0 0.0
          %572 = vmatprep.subr.mxu0 0.0
          %573 = vmatpush1.msra.mxu0 0.0
          %574 = vmatprep.subr.mxu0 0.0
          %575 = vmatpush1.msra.mxu0 0.0
          %576 = vmatprep.subr.mxu0 0.0
          %577 = vmatpush1.msra.mxu0 0.0
          %578 = vmatprep.subr.mxu0 0.0
          %579 = vmatpush1.msra.mxu0 0.0
          %580 = vmatprep.subr.mxu0 0.0
          %581 = vmatpush1.msra.mxu0 0.0
          %582 = vmatprep.subr.mxu0 0.0
          %583 = vmatpush1.msra.mxu0 0.0
          %584 = vmatprep.subr.mxu0 0.0
          %585 = vmatpush1.msra.mxu0 0.0
          %586 = vmatprep.subr.mxu0 0.0
          %587 = vmatpush1.msra.mxu0 0.0
          %588 = vmatprep.subr.mxu0 0.0
          %589 = vmatpush1.msra.mxu0 0.0
          %590 = vmatprep.subr.mxu0 0.0
          %591 = vmatpush1.msra.mxu0 0.0
          %592 = vmatprep.subr.mxu0 0.0
          %593 = vmatpush1.msra.mxu0 %v564
          %594 = vmatprep.subr.mxu0 0.0
          %595 = vmatpush1.msra.mxu0 %v563
          %596 = vmatprep.subr.mxu0 0.0
          %597 = vmatpush1.msra.mxu0 %v562
          %598 = vmatprep.subr.mxu0 0.0
          %599 = vmatpush1.msra.mxu0 %v561
          %600 = vmatprep.subr.mxu0 0.0
          %601 = vmatpush2.msra.mxu0 0.0
          %602 = vmatprep.subr.mxu0 0.0
          %603 = vmatpush2.msra.mxu0 0.0
          %604 = vmatprep.subr.mxu0 0.0
          %605 = vmatpush2.msra.mxu0 0.0
          %606 = vmatprep.subr.mxu0 0.0
          %607 = vmatpush2.msra.mxu0 0.0
          %608 = vmatprep.subr.mxu0 0.0
          %609 = vmatpush2.msra.mxu0 0.0
          %610 = vmatprep.subr.mxu0 0.0
          %611 = vmatpush2.msra.mxu0 0.0
          %612 = vmatprep.subr.mxu0 0.0
          %613 = vmatpush2.msra.mxu0 0.0
          %614 = vmatprep.subr.mxu0 0.0
          %615 = vmatpush2.msra.mxu0 0.0
          %616 = vmatprep.subr.mxu0 0.0
          %617 = vmatpush2.msra.mxu0 0.0
          %618 = vmatprep.subr.mxu0 0.0
          %619 = vmatpush2.msra.mxu0 0.0
          %620 = vmatprep.subr.mxu0 0.0
          %621 = vmatpush2.msra.mxu0 0.0
          %622 = vmatprep.subr.mxu0 0.0
          %623 = vmatpush2.msra.mxu0 0.0
          %624 = vmatprep.subr.mxu0 0.0
          %625 = vmatpush2.msra.mxu0 0.0
          %626 = vmatprep.subr.mxu0 0.0
          %627 = vmatpush2.msra.mxu0 0.0
          %628 = vmatprep.subr.mxu0 0.0
          %629 = vmatpush2.msra.mxu0 0.0
          %630 = vmatprep.subr.mxu0 0.0
          %631 = vmatpush2.msra.mxu0 0.0
          %632 = vmatprep.mubr.f32.mxu0 0.0
          %633 = vmatmul.mubr.f32.gmra.mxu0 %v566
          %v634 = vpop.f32.mrf.mxu0
          %v635 = vadd.f32 0.0, %v634
          %v636 = vpop.f32.mrf.mxu0
          %637 = vdwg.mxu0
          %638 = vst.msk [vmem:[#allocation2] sm:$0xff] %vm532, %v635
          %vm639 = vcmask 7168
          %640 = vst.msk [vmem:[#allocation4] sm:$0xff] %vm639, -inf
          %641 = vst.msk [vmem:[#allocation4 + $0x8] sm:$0xff] %vm639, -inf
          %642 = vst.msk [vmem:[#allocation4 + $0x10] sm:$0xff] %vm639, -inf
          %643 = vst.msk [vmem:[#allocation4 + $0x18] sm:$0xff] %vm639, -inf
          %644 = vst.msk [vmem:[#allocation5] sm:$0xff] %vm639, 0.0
          %645 = vst.msk [vmem:[#allocation5 + $0x8] sm:$0xff] %vm639, 0.0
          %646 = vst.msk [vmem:[#allocation5 + $0x10] sm:$0xff] %vm639, 0.0
          %647 = vst.msk [vmem:[#allocation5 + $0x18] sm:$0xff] %vm639, 0.0
          %648 = vst.msk [vmem:[#allocation3] sm:$0xff] %vm532, 0.0
        $region92: #{tpu_custom_call.1} parent=63 // pred_fallthru
          _
        %v649 = vld [vmem:[%s465] sm:$0xff]
        %v650 = vld [vmem:[%s4] sm:$0x1]
        %v651 = vld [vmem:[%s5] sm:$0x1]
        %vm652 = vcmask 130048
        %v653 = vsel %vm652, %v649, 0.0
        %654 = vadd.xlane.f32.xlu0 %v653
        %v655 = vpop.xlane.xlu0 %654
        %v656 = vrcp.pop 16.0
        %v657 = vmul.f32 %v655, %v656
        %v658 = vsub.f32 %v649, %v657
        %v659 = vmul.f32 %v658, %v658
        %v660 = vsel %vm652, %v659, 0.0
        %661 = vadd.xlane.f32.xlu0 %v660
        %v662 = vpop.xlane.xlu0 %661
        %v663 = vmul.f32 %v662, %v656
        %v664 = vadd.f32 %v663, 1e-05
        %v665 = vrsqrt.pop %v664
        %v666 = vmul.f32 %v658, %v665
        %v668 = vlaneseq
        %v669 = vshrl.u32 %v668, 7
        %v670 = vsub.s32 0, %v669
        %v671 = vrot.slane %v650, %v670
        %v673 = vmul.f32 %v666, %v671
        %v675 = vlaneseq
        %v676 = vshrl.u32 %v675, 7
        %v677 = vsub.s32 0, %v676
        %v678 = vrot.slane %v651, %v677
        %v680 = vadd.f32 %v673, %v678
        %v681 = vld [vmem:[#allocation12] sm:$0xff]
        %v682 = vld [vmem:[#allocation12 + $0x8] sm:$0xff]
        %v684 = vsel %vm652, %v680, 0
        %686 = vmatprep.subr.mxu0 0.0
        %687 = vmatpush1.msra.mxu0 0.0
        %688 = vmatprep.subr.mxu0 0.0
        %689 = vmatpush1.msra.mxu0 0.0
        %690 = vmatprep.subr.mxu0 0.0
        %691 = vmatpush1.msra.mxu0 0.0
        %692 = vmatprep.subr.mxu0 0.0
        %693 = vmatpush1.msra.mxu0 0.0
        %694 = vmatprep.subr.mxu0 0.0
        %695 = vmatpush1.msra.mxu0 0.0
        %696 = vmatprep.subr.mxu0 0.0
        %697 = vmatpush1.msra.mxu0 0.0
        %698 = vmatprep.subr.mxu0 0.0
        %699 = vmatpush1.msra.mxu0 0.0
        %700 = vmatprep.subr.mxu0 0.0
        %701 = vmatpush1.msra.mxu0 0.0
        %702 = vmatprep.subr.mxu0 0.0
        %703 = vmatpush1.msra.mxu0 0.0
        %704 = vmatprep.subr.mxu0 0.0
        %705 = vmatpush1.msra.mxu0 0.0
        %706 = vmatprep.subr.mxu0 0.0
        %707 = vmatpush1.msra.mxu0 0.0
        %708 = vmatprep.subr.mxu0 0.0
        %709 = vmatpush1.msra.mxu0 0.0
        %710 = vmatprep.subr.mxu0 0.0
        %711 = vmatpush1.msra.mxu0 0.0
        %712 = vmatprep.subr.mxu0 0.0
        %713 = vmatpush1.msra.mxu0 0.0
        %714 = vmatprep.subr.mxu0 0.0
        %715 = vmatpush1.msra.mxu0 %v682
        %716 = vmatprep.subr.mxu0 0.0
        %717 = vmatpush1.msra.mxu0 %v681
        %718 = vmatprep.subr.mxu0 0.0
        %719 = vmatpush2.msra.mxu0 0.0
        %720 = vmatprep.subr.mxu0 0.0
        %721 = vmatpush2.msra.mxu0 0.0
        %722 = vmatprep.subr.mxu0 0.0
        %723 = vmatpush2.msra.mxu0 0.0
        %724 = vmatprep.subr.mxu0 0.0
        %725 = vmatpush2.msra.mxu0 0.0
        %726 = vmatprep.subr.mxu0 0.0
        %727 = vmatpush2.msra.mxu0 0.0
        %728 = vmatprep.subr.mxu0 0.0
        %729 = vmatpush2.msra.mxu0 0.0
        %730 = vmatprep.subr.mxu0 0.0
        %731 = vmatpush2.msra.mxu0 0.0
        %732 = vmatprep.subr.mxu0 0.0
        %733 = vmatpush2.msra.mxu0 0.0
        %734 = vmatprep.subr.mxu0 0.0
        %735 = vmatpush2.msra.mxu0 0.0
        %736 = vmatprep.subr.mxu0 0.0
        %737 = vmatpush2.msra.mxu0 0.0
        %738 = vmatprep.subr.mxu0 0.0
        %739 = vmatpush2.msra.mxu0 0.0
        %740 = vmatprep.subr.mxu0 0.0
        %741 = vmatpush2.msra.mxu0 0.0
        %742 = vmatprep.subr.mxu0 0.0
        %743 = vmatpush2.msra.mxu0 0.0
        %744 = vmatprep.subr.mxu0 0.0
        %745 = vmatpush2.msra.mxu0 0.0
        %746 = vmatprep.subr.mxu0 0.0
        %747 = vmatpush2.msra.mxu0 0.0
        %748 = vmatprep.subr.mxu0 0.0
        %749 = vmatpush2.msra.mxu0 0.0
        %750 = vmatprep.mubr.f32.mxu0 0.0
        %751 = vmatmul.mubr.f32.gmra.mxu0 %v684
        %v752 = vpop.f32.mrf.mxu0
        %v753 = vadd.f32 0.0, %v752
        %v754 = vpop.f32.mrf.mxu0
        %755 = vdwg.mxu0
        %v756 = vld [vmem:[#allocation14] sm:$0xff]
        %v757 = vld [vmem:[#allocation14 + $0x8] sm:$0xff]
        %758 = vmatprep.subr.mxu0 0.0
        %759 = vmatpush1.msra.mxu0 0.0
        %760 = vmatprep.subr.mxu0 0.0
        %761 = vmatpush1.msra.mxu0 0.0
        %762 = vmatprep.subr.mxu0 0.0
        %763 = vmatpush1.msra.mxu0 0.0
        %764 = vmatprep.subr.mxu0 0.0
        %765 = vmatpush1.msra.mxu0 0.0
        %766 = vmatprep.subr.mxu0 0.0
        %767 = vmatpush1.msra.mxu0 0.0
        %768 = vmatprep.subr.mxu0 0.0
        %769 = vmatpush1.msra.mxu0 0.0
        %770 = vmatprep.subr.mxu0 0.0
        %771 = vmatpush1.msra.mxu0 0.0
        %772 = vmatprep.subr.mxu0 0.0
        %773 = vmatpush1.msra.mxu0 0.0
        %774 = vmatprep.subr.mxu0 0.0
        %775 = vmatpush1.msra.mxu0 0.0
        %776 = vmatprep.subr.mxu0 0.0
        %777 = vmatpush1.msra.mxu0 0.0
        %778 = vmatprep.subr.mxu0 0.0
        %779 = vmatpush1.msra.mxu0 0.0
        %780 = vmatprep.subr.mxu0 0.0
        %781 = vmatpush1.msra.mxu0 0.0
        %782 = vmatprep.subr.mxu0 0.0
        %783 = vmatpush1.msra.mxu0 0.0
        %784 = vmatprep.subr.mxu0 0.0
        %785 = vmatpush1.msra.mxu0 0.0
        %786 = vmatprep.subr.mxu0 0.0
        %787 = vmatpush1.msra.mxu0 %v757
        %788 = vmatprep.subr.mxu0 0.0
        %789 = vmatpush1.msra.mxu0 %v756
        %790 = vmatprep.subr.mxu0 0.0
        %791 = vmatpush2.msra.mxu0 0.0
        %792 = vmatprep.subr.mxu0 0.0
        %793 = vmatpush2.msra.mxu0 0.0
        %794 = vmatprep.subr.mxu0 0.0
        %795 = vmatpush2.msra.mxu0 0.0
        %796 = vmatprep.subr.mxu0 0.0
        %797 = vmatpush2.msra.mxu0 0.0
        %798 = vmatprep.subr.mxu0 0.0
        %799 = vmatpush2.msra.mxu0 0.0
        %800 = vmatprep.subr.mxu0 0.0
        %801 = vmatpush2.msra.mxu0 0.0
        %802 = vmatprep.subr.mxu0 0.0
        %803 = vmatpush2.msra.mxu0 0.0
        %804 = vmatprep.subr.mxu0 0.0
        %805 = vmatpush2.msra.mxu0 0.0
        %806 = vmatprep.subr.mxu0 0.0
        %807 = vmatpush2.msra.mxu0 0.0
        %808 = vmatprep.subr.mxu0 0.0
        %809 = vmatpush2.msra.mxu0 0.0
        %810 = vmatprep.subr.mxu0 0.0
        %811 = vmatpush2.msra.mxu0 0.0
        %812 = vmatprep.subr.mxu0 0.0
        %813 = vmatpush2.msra.mxu0 0.0
        %814 = vmatprep.subr.mxu0 0.0
        %815 = vmatpush2.msra.mxu0 0.0
        %816 = vmatprep.subr.mxu0 0.0
        %817 = vmatpush2.msra.mxu0 0.0
        %818 = vmatprep.subr.mxu0 0.0
        %819 = vmatpush2.msra.mxu0 0.0
        %820 = vmatprep.subr.mxu0 0.0
        %821 = vmatpush2.msra.mxu0 0.0
        %822 = vmatprep.mubr.f32.mxu0 0.0
        %823 = vmatmul.mubr.f32.gmra.mxu0 %v684
        %v824 = vpop.f32.mrf.mxu0
        %v825 = vadd.f32 0.0, %v824
        %v826 = vpop.f32.mrf.mxu0
        %827 = vdwg.mxu0
        %v828 = vld [vmem:[#allocation2] sm:$0xff]
        %vm829 = vcmask 64512
        %v831 = vsel %vm829, %v828, 0
        %v834 = vsel %vm829, %v753, 0
        %836 = vmatprep.subr.mxu0 0.0
        %837 = vmatpush1.xpose.msra.mxu0 0.0
        %838 = vmatprep.subr.mxu0 0.0
        %839 = vmatpush1.xpose.msra.mxu0 0.0
        %840 = vmatprep.subr.mxu0 0.0
        %841 = vmatpush1.xpose.msra.mxu0 0.0
        %842 = vmatprep.subr.mxu0 0.0
        %843 = vmatpush1.xpose.msra.mxu0 0.0
        %844 = vmatprep.subr.mxu0 0.0
        %845 = vmatpush1.xpose.msra.mxu0 0.0
        %846 = vmatprep.subr.mxu0 0.0
        %847 = vmatpush1.xpose.msra.mxu0 0.0
        %848 = vmatprep.subr.mxu0 0.0
        %849 = vmatpush1.xpose.msra.mxu0 0.0
        %850 = vmatprep.subr.mxu0 0.0
        %851 = vmatpush1.xpose.msra.mxu0 0.0
        %852 = vmatprep.subr.mxu0 0.0
        %853 = vmatpush1.xpose.msra.mxu0 0.0
        %854 = vmatprep.subr.mxu0 0.0
        %855 = vmatpush1.xpose.msra.mxu0 0.0
        %856 = vmatprep.subr.mxu0 0.0
        %857 = vmatpush1.xpose.msra.mxu0 0.0
        %858 = vmatprep.subr.mxu0 0.0
        %859 = vmatpush1.xpose.msra.mxu0 0.0
        %860 = vmatprep.subr.mxu0 0.0
        %861 = vmatpush1.xpose.msra.mxu0 0.0
        %862 = vmatprep.subr.mxu0 0.0
        %863 = vmatpush1.xpose.msra.mxu0 0.0
        %864 = vmatprep.subr.mxu0 0.0
        %865 = vmatpush1.xpose.msra.mxu0 0.0
        %866 = vmatprep.subr.mxu0 0.0
        %867 = vmatpush1.xpose.msra.mxu0 %v834
        %868 = vmatprep.subr.mxu0 0.0
        %869 = vmatpush2.xpose.msra.mxu0 0.0
        %870 = vmatprep.subr.mxu0 0.0
        %871 = vmatpush2.xpose.msra.mxu0 0.0
        %872 = vmatprep.subr.mxu0 0.0
        %873 = vmatpush2.xpose.msra.mxu0 0.0
        %874 = vmatprep.subr.mxu0 0.0
        %875 = vmatpush2.xpose.msra.mxu0 0.0
        %876 = vmatprep.subr.mxu0 0.0
        %877 = vmatpush2.xpose.msra.mxu0 0.0
        %878 = vmatprep.subr.mxu0 0.0
        %879 = vmatpush2.xpose.msra.mxu0 0.0
        %880 = vmatprep.subr.mxu0 0.0
        %881 = vmatpush2.xpose.msra.mxu0 0.0
        %882 = vmatprep.subr.mxu0 0.0
        %883 = vmatpush2.xpose.msra.mxu0 0.0
        %884 = vmatprep.subr.mxu0 0.0
        %885 = vmatpush2.xpose.msra.mxu0 0.0
        %886 = vmatprep.subr.mxu0 0.0
        %887 = vmatpush2.xpose.msra.mxu0 0.0
        %888 = vmatprep.subr.mxu0 0.0
        %889 = vmatpush2.xpose.msra.mxu0 0.0
        %890 = vmatprep.subr.mxu0 0.0
        %891 = vmatpush2.xpose.msra.mxu0 0.0
        %892 = vmatprep.subr.mxu0 0.0
        %893 = vmatpush2.xpose.msra.mxu0 0.0
        %894 = vmatprep.subr.mxu0 0.0
        %895 = vmatpush2.xpose.msra.mxu0 0.0
        %896 = vmatprep.subr.mxu0 0.0
        %897 = vmatpush2.xpose.msra.mxu0 0.0
        %898 = vmatprep.subr.mxu0 0.0
        %899 = vmatpush2.xpose.msra.mxu0 0.0
        %900 = vmatprep.mubr.f32.mxu0 0.0
        %901 = vmatmul.mubr.f32.gmra.mxu0 %v831
        %v902 = vpop.f32.mrf.mxu0
        %v903 = vadd.f32 0.0, %v902
        %v904 = vpop.f32.mrf.mxu0
        %905 = vdwg.mxu0
        %v906 = vld [vmem:[#allocation4] sm:$0xff]
        %v907 = vsel %vm829, %v903, -inf
        %908 = vmax.xlane.f32.xlu0 %v907
        %v909 = vpop.xlane.xlu0 %908
        %v910 = vmax.f32 %v906, %v909
        %v911 = vsub.f32 %v906, %v910
        %v912 = vmul.f32 %v911, 1.442695
        %v913 = vpow.pop %v912
        %915 = vset.pattern.permute.xlu0 0
        %916 = vperm.xlu0 %915, %v910
        %v917 = vpop.permute.xlu0 %916
        %v919 = vsub.f32 %v903, %v917
        %v920 = vmul.f32 %v919, 1.442695
        %v921 = vpow.pop %v920
        %v922 = vld [vmem:[#allocation5] sm:$0xff]
        %v923 = vmul.f32 %v913, %v922
        %v924 = vsel %vm829, %v921, 0.0
        %925 = vadd.xlane.f32.xlu0 %v924
        %v926 = vpop.xlane.xlu0 %925
        %v927 = vadd.f32 %v923, %v926
        %vm928 = vcmask 7168
        %929 = vst.msk [vmem:[#allocation5] sm:$0xff] %vm928, %v927
        %v931 = vsel %vm829, %v921, 0
        %933 = vmatprep.subr.mxu0 0.0
        %934 = vmatpush1.msra.mxu0 0.0
        %935 = vmatprep.subr.mxu0 0.0
        %936 = vmatpush1.msra.mxu0 0.0
        %937 = vmatprep.subr.mxu0 0.0
        %938 = vmatpush1.msra.mxu0 0.0
        %939 = vmatprep.subr.mxu0 0.0
        %940 = vmatpush1.msra.mxu0 0.0
        %941 = vmatprep.subr.mxu0 0.0
        %942 = vmatpush1.msra.mxu0 0.0
        %943 = vmatprep.subr.mxu0 0.0
        %944 = vmatpush1.msra.mxu0 0.0
        %945 = vmatprep.subr.mxu0 0.0
        %946 = vmatpush1.msra.mxu0 0.0
        %947 = vmatprep.subr.mxu0 0.0
        %948 = vmatpush1.msra.mxu0 0.0
        %949 = vmatprep.subr.mxu0 0.0
        %950 = vmatpush1.msra.mxu0 0.0
        %951 = vmatprep.subr.mxu0 0.0
        %952 = vmatpush1.msra.mxu0 0.0
        %953 = vmatprep.subr.mxu0 0.0
        %954 = vmatpush1.msra.mxu0 0.0
        %955 = vmatprep.subr.mxu0 0.0
        %956 = vmatpush1.msra.mxu0 0.0
        %957 = vmatprep.subr.mxu0 0.0
        %958 = vmatpush1.msra.mxu0 0.0
        %959 = vmatprep.subr.mxu0 0.0
        %960 = vmatpush1.msra.mxu0 0.0
        %961 = vmatprep.subr.mxu0 0.0
        %962 = vmatpush1.msra.mxu0 0.0
        %963 = vmatprep.subr.mxu0 0.0
        %964 = vmatpush1.msra.mxu0 %v825
        %965 = vmatprep.subr.mxu0 0.0
        %966 = vmatpush2.msra.mxu0 0.0
        %967 = vmatprep.subr.mxu0 0.0
        %968 = vmatpush2.msra.mxu0 0.0
        %969 = vmatprep.subr.mxu0 0.0
        %970 = vmatpush2.msra.mxu0 0.0
        %971 = vmatprep.subr.mxu0 0.0
        %972 = vmatpush2.msra.mxu0 0.0
        %973 = vmatprep.subr.mxu0 0.0
        %974 = vmatpush2.msra.mxu0 0.0
        %975 = vmatprep.subr.mxu0 0.0
        %976 = vmatpush2.msra.mxu0 0.0
        %977 = vmatprep.subr.mxu0 0.0
        %978 = vmatpush2.msra.mxu0 0.0
        %979 = vmatprep.subr.mxu0 0.0
        %980 = vmatpush2.msra.mxu0 0.0
        %981 = vmatprep.subr.mxu0 0.0
        %982 = vmatpush2.msra.mxu0 0.0
        %983 = vmatprep.subr.mxu0 0.0
        %984 = vmatpush2.msra.mxu0 0.0
        %985 = vmatprep.subr.mxu0 0.0
        %986 = vmatpush2.msra.mxu0 0.0
        %987 = vmatprep.subr.mxu0 0.0
        %988 = vmatpush2.msra.mxu0 0.0
        %989 = vmatprep.subr.mxu0 0.0
        %990 = vmatpush2.msra.mxu0 0.0
        %991 = vmatprep.subr.mxu0 0.0
        %992 = vmatpush2.msra.mxu0 0.0
        %993 = vmatprep.subr.mxu0 0.0
        %994 = vmatpush2.msra.mxu0 0.0
        %995 = vmatprep.subr.mxu0 0.0
        %996 = vmatpush2.msra.mxu0 0.0
        %997 = vmatprep.mubr.f32.mxu0 0.0
        %998 = vmatmul.mubr.f32.gmra.mxu0 %v931
        %v999 = vpop.f32.mrf.mxu0
        %v1000 = vadd.f32 0.0, %v999
        %v1001 = vpop.f32.mrf.mxu0
        %1002 = vdwg.mxu0
        %v1003 = vld [vmem:[#allocation3] sm:$0xff]
        %1005 = vset.pattern.permute.xlu0 0
        %1006 = vperm.xlu0 %1005, %v913
        %v1007 = vpop.permute.xlu0 %1006
        %v1009 = vmul.f32 %v1007, %v1003
        %v1010 = vadd.f32 %v1009, %v1000
        %1011 = vst.msk [vmem:[#allocation3] sm:$0xff] %vm829, %v1010
        %1012 = vst.msk [vmem:[#allocation4] sm:$0xff] %vm928, %v910
        %v1013 = vld [vmem:[#allocation2] sm:$0xff]
        %1015 = vrot.lane.b32.xlu0 %v1013, 120
        %v1016 = vpop.permute.xlu0 %1015
        %1017 = vrot.lane.b32.xlu0 %v753, 120
        %v1018 = vpop.permute.xlu0 %1017
        %v1019 = vsel %vm829, %v1016, 0
        %v1021 = vsel %vm829, %v1018, 0
        %1023 = vmatprep.subr.mxu0 0.0
        %1024 = vmatpush1.xpose.msra.mxu0 0.0
        %1025 = vmatprep.subr.mxu0 0.0
        %1026 = vmatpush1.xpose.msra.mxu0 0.0
        %1027 = vmatprep.subr.mxu0 0.0
        %1028 = vmatpush1.xpose.msra.mxu0 0.0
        %1029 = vmatprep.subr.mxu0 0.0
        %1030 = vmatpush1.xpose.msra.mxu0 0.0
        %1031 = vmatprep.subr.mxu0 0.0
        %1032 = vmatpush1.xpose.msra.mxu0 0.0
        %1033 = vmatprep.subr.mxu0 0.0
        %1034 = vmatpush1.xpose.msra.mxu0 0.0
        %1035 = vmatprep.subr.mxu0 0.0
        %1036 = vmatpush1.xpose.msra.mxu0 0.0
        %1037 = vmatprep.subr.mxu0 0.0
        %1038 = vmatpush1.xpose.msra.mxu0 0.0
        %1039 = vmatprep.subr.mxu0 0.0
        %1040 = vmatpush1.xpose.msra.mxu0 0.0
        %1041 = vmatprep.subr.mxu0 0.0
        %1042 = vmatpush1.xpose.msra.mxu0 0.0
        %1043 = vmatprep.subr.mxu0 0.0
        %1044 = vmatpush1.xpose.msra.mxu0 0.0
        %1045 = vmatprep.subr.mxu0 0.0
        %1046 = vmatpush1.xpose.msra.mxu0 0.0
        %1047 = vmatprep.subr.mxu0 0.0
        %1048 = vmatpush1.xpose.msra.mxu0 0.0
        %1049 = vmatprep.subr.mxu0 0.0
        %1050 = vmatpush1.xpose.msra.mxu0 0.0
        %1051 = vmatprep.subr.mxu0 0.0
        %1052 = vmatpush1.xpose.msra.mxu0 0.0
        %1053 = vmatprep.subr.mxu0 0.0
        %1054 = vmatpush1.xpose.msra.mxu0 %v1021
        %1055 = vmatprep.subr.mxu0 0.0
        %1056 = vmatpush2.xpose.msra.mxu0 0.0
        %1057 = vmatprep.subr.mxu0 0.0
        %1058 = vmatpush2.xpose.msra.mxu0 0.0
        %1059 = vmatprep.subr.mxu0 0.0
        %1060 = vmatpush2.xpose.msra.mxu0 0.0
        %1061 = vmatprep.subr.mxu0 0.0
        %1062 = vmatpush2.xpose.msra.mxu0 0.0
        %1063 = vmatprep.subr.mxu0 0.0
        %1064 = vmatpush2.xpose.msra.mxu0 0.0
        %1065 = vmatprep.subr.mxu0 0.0
        %1066 = vmatpush2.xpose.msra.mxu0 0.0
        %1067 = vmatprep.subr.mxu0 0.0
        %1068 = vmatpush2.xpose.msra.mxu0 0.0
        %1069 = vmatprep.subr.mxu0 0.0
        %1070 = vmatpush2.xpose.msra.mxu0 0.0
        %1071 = vmatprep.subr.mxu0 0.0
        %1072 = vmatpush2.xpose.msra.mxu0 0.0
        %1073 = vmatprep.subr.mxu0 0.0
        %1074 = vmatpush2.xpose.msra.mxu0 0.0
        %1075 = vmatprep.subr.mxu0 0.0
        %1076 = vmatpush2.xpose.msra.mxu0 0.0
        %1077 = vmatprep.subr.mxu0 0.0
        %1078 = vmatpush2.xpose.msra.mxu0 0.0
        %1079 = vmatprep.subr.mxu0 0.0
        %1080 = vmatpush2.xpose.msra.mxu0 0.0
        %1081 = vmatprep.subr.mxu0 0.0
        %1082 = vmatpush2.xpose.msra.mxu0 0.0
        %1083 = vmatprep.subr.mxu0 0.0
        %1084 = vmatpush2.xpose.msra.mxu0 0.0
        %1085 = vmatprep.subr.mxu0 0.0
        %1086 = vmatpush2.xpose.msra.mxu0 0.0
        %1087 = vmatprep.mubr.f32.mxu0 0.0
        %1088 = vmatmul.mubr.f32.gmra.mxu0 %v1019
        %v1089 = vpop.f32.mrf.mxu0
        %v1090 = vadd.f32 0.0, %v1089
        %v1091 = vpop.f32.mrf.mxu0
        %1092 = vdwg.mxu0
        %s1093 = scalar_lea.vmem [#allocation4], 8
        %v1094 = vld [vmem:[%s1093] sm:$0xff]
        %v1095 = vsel %vm829, %v1090, -inf
        %1096 = vmax.xlane.f32.xlu0 %v1095
        %v1097 = vpop.xlane.xlu0 %1096
        %v1098 = vmax.f32 %v1094, %v1097
        %v1099 = vsub.f32 %v1094, %v1098
        %v1100 = vmul.f32 %v1099, 1.442695
        %v1101 = vpow.pop %v1100
        %1103 = vset.pattern.permute.xlu0 0
        %1104 = vperm.xlu0 %1103, %v1098
        %v1105 = vpop.permute.xlu0 %1104
        %v1107 = vsub.f32 %v1090, %v1105
        %v1108 = vmul.f32 %v1107, 1.442695
        %v1109 = vpow.pop %v1108
        %s1110 = scalar_lea.vmem [#allocation5], 8
        %v1111 = vld [vmem:[%s1110] sm:$0xff]
        %v1112 = vmul.f32 %v1101, %v1111
        %v1113 = vsel %vm829, %v1109, 0.0
        %1114 = vadd.xlane.f32.xlu0 %v1113
        %v1115 = vpop.xlane.xlu0 %1114
        %v1116 = vadd.f32 %v1112, %v1115
        %1117 = vst.msk [vmem:[%s1110] sm:$0xff] %vm928, %v1116
        %1119 = vrot.lane.b32.xlu0 %v825, 120
        %v1120 = vpop.permute.xlu0 %1119
        %v1123 = vsel %vm829, %v1109, 0
        %1125 = vmatprep.subr.mxu0 0.0
        %1126 = vmatpush1.msra.mxu0 0.0
        %1127 = vmatprep.subr.mxu0 0.0
        %1128 = vmatpush1.msra.mxu0 0.0
        %1129 = vmatprep.subr.mxu0 0.0
        %1130 = vmatpush1.msra.mxu0 0.0
        %1131 = vmatprep.subr.mxu0 0.0
        %1132 = vmatpush1.msra.mxu0 0.0
        %1133 = vmatprep.subr.mxu0 0.0
        %1134 = vmatpush1.msra.mxu0 0.0
        %1135 = vmatprep.subr.mxu0 0.0
        %1136 = vmatpush1.msra.mxu0 0.0
        %1137 = vmatprep.subr.mxu0 0.0
        %1138 = vmatpush1.msra.mxu0 0.0
        %1139 = vmatprep.subr.mxu0 0.0
        %1140 = vmatpush1.msra.mxu0 0.0
        %1141 = vmatprep.subr.mxu0 0.0
        %1142 = vmatpush1.msra.mxu0 0.0
        %1143 = vmatprep.subr.mxu0 0.0
        %1144 = vmatpush1.msra.mxu0 0.0
        %1145 = vmatprep.subr.mxu0 0.0
        %1146 = vmatpush1.msra.mxu0 0.0
        %1147 = vmatprep.subr.mxu0 0.0
        %1148 = vmatpush1.msra.mxu0 0.0
        %1149 = vmatprep.subr.mxu0 0.0
        %1150 = vmatpush1.msra.mxu0 0.0
        %1151 = vmatprep.subr.mxu0 0.0
        %1152 = vmatpush1.msra.mxu0 0.0
        %1153 = vmatprep.subr.mxu0 0.0
        %1154 = vmatpush1.msra.mxu0 0.0
        %1155 = vmatprep.subr.mxu0 0.0
        %1156 = vmatpush1.msra.mxu0 %v1120
        %1157 = vmatprep.subr.mxu0 0.0
        %1158 = vmatpush2.msra.mxu0 0.0
        %1159 = vmatprep.subr.mxu0 0.0
        %1160 = vmatpush2.msra.mxu0 0.0
        %1161 = vmatprep.subr.mxu0 0.0
        %1162 = vmatpush2.msra.mxu0 0.0
        %1163 = vmatprep.subr.mxu0 0.0
        %1164 = vmatpush2.msra.mxu0 0.0
        %1165 = vmatprep.subr.mxu0 0.0
        %1166 = vmatpush2.msra.mxu0 0.0
        %1167 = vmatprep.subr.mxu0 0.0
        %1168 = vmatpush2.msra.mxu0 0.0
        %1169 = vmatprep.subr.mxu0 0.0
        %1170 = vmatpush2.msra.mxu0 0.0
        %1171 = vmatprep.subr.mxu0 0.0
        %1172 = vmatpush2.msra.mxu0 0.0
        %1173 = vmatprep.subr.mxu0 0.0
        %1174 = vmatpush2.msra.mxu0 0.0
        %1175 = vmatprep.subr.mxu0 0.0
        %1176 = vmatpush2.msra.mxu0 0.0
        %1177 = vmatprep.subr.mxu0 0.0
        %1178 = vmatpush2.msra.mxu0 0.0
        %1179 = vmatprep.subr.mxu0 0.0
        %1180 = vmatpush2.msra.mxu0 0.0
        %1181 = vmatprep.subr.mxu0 0.0
        %1182 = vmatpush2.msra.mxu0 0.0
        %1183 = vmatprep.subr.mxu0 0.0
        %1184 = vmatpush2.msra.mxu0 0.0
        %1185 = vmatprep.subr.mxu0 0.0
        %1186 = vmatpush2.msra.mxu0 0.0
        %1187 = vmatprep.subr.mxu0 0.0
        %1188 = vmatpush2.msra.mxu0 0.0
        %1189 = vmatprep.mubr.f32.mxu0 0.0
        %1190 = vmatmul.mubr.f32.gmra.mxu0 %v1123
        %v1191 = vpop.f32.mrf.mxu0
        %v1192 = vadd.f32 0.0, %v1191
        %v1193 = vpop.f32.mrf.mxu0
        %1194 = vdwg.mxu0
        %v1195 = vld [vmem:[#allocation3] sm:$0xff]
        %1197 = vset.pattern.permute.xlu0 0
        %1198 = vperm.xlu0 %1197, %v1101
        %v1199 = vpop.permute.xlu0 %1198
        %v1201 = vmul.f32 %v1199, %v1195
        %1203 = vrot.lane.b32.xlu0 %v1192, 8
        %v1204 = vpop.permute.xlu0 %1203
        %v1206 = vadd.f32 %v1201, %v1204
        %vm1207 = vcmask 130112
        %1208 = vst.msk [vmem:[#allocation3] sm:$0xff] %vm1207, %v1206
        %1209 = vst.msk [vmem:[%s1093] sm:$0xff] %vm928, %v1098
        %v1210 = vld [vmem:[#allocation2] sm:$0xff]
        %1212 = vrot.lane.b32.xlu0 %v1210, 112
        %v1213 = vpop.permute.xlu0 %1212
        %1214 = vrot.lane.b32.xlu0 %v753, 112
        %v1215 = vpop.permute.xlu0 %1214
        %v1216 = vsel %vm829, %v1213, 0
        %v1218 = vsel %vm829, %v1215, 0
        %1220 = vmatprep.subr.mxu0 0.0
        %1221 = vmatpush1.xpose.msra.mxu0 0.0
        %1222 = vmatprep.subr.mxu0 0.0
        %1223 = vmatpush1.xpose.msra.mxu0 0.0
        %1224 = vmatprep.subr.mxu0 0.0
        %1225 = vmatpush1.xpose.msra.mxu0 0.0
        %1226 = vmatprep.subr.mxu0 0.0
        %1227 = vmatpush1.xpose.msra.mxu0 0.0
        %1228 = vmatprep.subr.mxu0 0.0
        %1229 = vmatpush1.xpose.msra.mxu0 0.0
        %1230 = vmatprep.subr.mxu0 0.0
        %1231 = vmatpush1.xpose.msra.mxu0 0.0
        %1232 = vmatprep.subr.mxu0 0.0
        %1233 = vmatpush1.xpose.msra.mxu0 0.0
        %1234 = vmatprep.subr.mxu0 0.0
        %1235 = vmatpush1.xpose.msra.mxu0 0.0
        %1236 = vmatprep.subr.mxu0 0.0
        %1237 = vmatpush1.xpose.msra.mxu0 0.0
        %1238 = vmatprep.subr.mxu0 0.0
        %1239 = vmatpush1.xpose.msra.mxu0 0.0
        %1240 = vmatprep.subr.mxu0 0.0
        %1241 = vmatpush1.xpose.msra.mxu0 0.0
        %1242 = vmatprep.subr.mxu0 0.0
        %1243 = vmatpush1.xpose.msra.mxu0 0.0
        %1244 = vmatprep.subr.mxu0 0.0
        %1245 = vmatpush1.xpose.msra.mxu0 0.0
        %1246 = vmatprep.subr.mxu0 0.0
        %1247 = vmatpush1.xpose.msra.mxu0 0.0
        %1248 = vmatprep.subr.mxu0 0.0
        %1249 = vmatpush1.xpose.msra.mxu0 0.0
        %1250 = vmatprep.subr.mxu0 0.0
        %1251 = vmatpush1.xpose.msra.mxu0 %v1218
        %1252 = vmatprep.subr.mxu0 0.0
        %1253 = vmatpush2.xpose.msra.mxu0 0.0
        %1254 = vmatprep.subr.mxu0 0.0
        %1255 = vmatpush2.xpose.msra.mxu0 0.0
        %1256 = vmatprep.subr.mxu0 0.0
        %1257 = vmatpush2.xpose.msra.mxu0 0.0
        %1258 = vmatprep.subr.mxu0 0.0
        %1259 = vmatpush2.xpose.msra.mxu0 0.0
        %1260 = vmatprep.subr.mxu0 0.0
        %1261 = vmatpush2.xpose.msra.mxu0 0.0
        %1262 = vmatprep.subr.mxu0 0.0
        %1263 = vmatpush2.xpose.msra.mxu0 0.0
        %1264 = vmatprep.subr.mxu0 0.0
        %1265 = vmatpush2.xpose.msra.mxu0 0.0
        %1266 = vmatprep.subr.mxu0 0.0
        %1267 = vmatpush2.xpose.msra.mxu0 0.0
        %1268 = vmatprep.subr.mxu0 0.0
        %1269 = vmatpush2.xpose.msra.mxu0 0.0
        %1270 = vmatprep.subr.mxu0 0.0
        %1271 = vmatpush2.xpose.msra.mxu0 0.0
        %1272 = vmatprep.subr.mxu0 0.0
        %1273 = vmatpush2.xpose.msra.mxu0 0.0
        %1274 = vmatprep.subr.mxu0 0.0
        %1275 = vmatpush2.xpose.msra.mxu0 0.0
        %1276 = vmatprep.subr.mxu0 0.0
        %1277 = vmatpush2.xpose.msra.mxu0 0.0
        %1278 = vmatprep.subr.mxu0 0.0
        %1279 = vmatpush2.xpose.msra.mxu0 0.0
        %1280 = vmatprep.subr.mxu0 0.0
        %1281 = vmatpush2.xpose.msra.mxu0 0.0
        %1282 = vmatprep.subr.mxu0 0.0
        %1283 = vmatpush2.xpose.msra.mxu0 0.0
        %1284 = vmatprep.mubr.f32.mxu0 0.0
        %1285 = vmatmul.mubr.f32.gmra.mxu0 %v1216
        %v1286 = vpop.f32.mrf.mxu0
        %v1287 = vadd.f32 0.0, %v1286
        %v1288 = vpop.f32.mrf.mxu0
        %1289 = vdwg.mxu0
        %s1290 = scalar_lea.vmem [#allocation4], 16
        %v1291 = vld [vmem:[%s1290] sm:$0xff]
        %v1292 = vsel %vm829, %v1287, -inf
        %1293 = vmax.xlane.f32.xlu0 %v1292
        %v1294 = vpop.xlane.xlu0 %1293
        %v1295 = vmax.f32 %v1291, %v1294
        %v1296 = vsub.f32 %v1291, %v1295
        %v1297 = vmul.f32 %v1296, 1.442695
        %v1298 = vpow.pop %v1297
        %1300 = vset.pattern.permute.xlu0 0
        %1301 = vperm.xlu0 %1300, %v1295
        %v1302 = vpop.permute.xlu0 %1301
        %v1304 = vsub.f32 %v1287, %v1302
        %v1305 = vmul.f32 %v1304, 1.442695
        %v1306 = vpow.pop %v1305
        %s1307 = scalar_lea.vmem [#allocation5], 16
        %v1308 = vld [vmem:[%s1307] sm:$0xff]
        %v1309 = vmul.f32 %v1298, %v1308
        %v1310 = vsel %vm829, %v1306, 0.0
        %1311 = vadd.xlane.f32.xlu0 %v1310
        %v1312 = vpop.xlane.xlu0 %1311
        %v1313 = vadd.f32 %v1309, %v1312
        %1314 = vst.msk [vmem:[%s1307] sm:$0xff] %vm928, %v1313
        %1315 = vrot.lane.b32.xlu0 %v825, 112
        %v1316 = vpop.permute.xlu0 %1315
        %v1319 = vsel %vm829, %v1306, 0
        %1321 = vmatprep.subr.mxu0 0.0
        %1322 = vmatpush1.msra.mxu0 0.0
        %1323 = vmatprep.subr.mxu0 0.0
        %1324 = vmatpush1.msra.mxu0 0.0
        %1325 = vmatprep.subr.mxu0 0.0
        %1326 = vmatpush1.msra.mxu0 0.0
        %1327 = vmatprep.subr.mxu0 0.0
        %1328 = vmatpush1.msra.mxu0 0.0
        %1329 = vmatprep.subr.mxu0 0.0
        %1330 = vmatpush1.msra.mxu0 0.0
        %1331 = vmatprep.subr.mxu0 0.0
        %1332 = vmatpush1.msra.mxu0 0.0
        %1333 = vmatprep.subr.mxu0 0.0
        %1334 = vmatpush1.msra.mxu0 0.0
        %1335 = vmatprep.subr.mxu0 0.0
        %1336 = vmatpush1.msra.mxu0 0.0
        %1337 = vmatprep.subr.mxu0 0.0
        %1338 = vmatpush1.msra.mxu0 0.0
        %1339 = vmatprep.subr.mxu0 0.0
        %1340 = vmatpush1.msra.mxu0 0.0
        %1341 = vmatprep.subr.mxu0 0.0
        %1342 = vmatpush1.msra.mxu0 0.0
        %1343 = vmatprep.subr.mxu0 0.0
        %1344 = vmatpush1.msra.mxu0 0.0
        %1345 = vmatprep.subr.mxu0 0.0
        %1346 = vmatpush1.msra.mxu0 0.0
        %1347 = vmatprep.subr.mxu0 0.0
        %1348 = vmatpush1.msra.mxu0 0.0
        %1349 = vmatprep.subr.mxu0 0.0
        %1350 = vmatpush1.msra.mxu0 0.0
        %1351 = vmatprep.subr.mxu0 0.0
        %1352 = vmatpush1.msra.mxu0 %v1316
        %1353 = vmatprep.subr.mxu0 0.0
        %1354 = vmatpush2.msra.mxu0 0.0
        %1355 = vmatprep.subr.mxu0 0.0
        %1356 = vmatpush2.msra.mxu0 0.0
        %1357 = vmatprep.subr.mxu0 0.0
        %1358 = vmatpush2.msra.mxu0 0.0
        %1359 = vmatprep.subr.mxu0 0.0
        %1360 = vmatpush2.msra.mxu0 0.0
        %1361 = vmatprep.subr.mxu0 0.0
        %1362 = vmatpush2.msra.mxu0 0.0
        %1363 = vmatprep.subr.mxu0 0.0
        %1364 = vmatpush2.msra.mxu0 0.0
        %1365 = vmatprep.subr.mxu0 0.0
        %1366 = vmatpush2.msra.mxu0 0.0
        %1367 = vmatprep.subr.mxu0 0.0
        %1368 = vmatpush2.msra.mxu0 0.0
        %1369 = vmatprep.subr.mxu0 0.0
        %1370 = vmatpush2.msra.mxu0 0.0
        %1371 = vmatprep.subr.mxu0 0.0
        %1372 = vmatpush2.msra.mxu0 0.0
        %1373 = vmatprep.subr.mxu0 0.0
        %1374 = vmatpush2.msra.mxu0 0.0
        %1375 = vmatprep.subr.mxu0 0.0
        %1376 = vmatpush2.msra.mxu0 0.0
        %1377 = vmatprep.subr.mxu0 0.0
        %1378 = vmatpush2.msra.mxu0 0.0
        %1379 = vmatprep.subr.mxu0 0.0
        %1380 = vmatpush2.msra.mxu0 0.0
        %1381 = vmatprep.subr.mxu0 0.0
        %1382 = vmatpush2.msra.mxu0 0.0
        %1383 = vmatprep.subr.mxu0 0.0
        %1384 = vmatpush2.msra.mxu0 0.0
        %1385 = vmatprep.mubr.f32.mxu0 0.0
        %1386 = vmatmul.mubr.f32.gmra.mxu0 %v1319
        %v1387 = vpop.f32.mrf.mxu0
        %v1388 = vadd.f32 0.0, %v1387
        %v1389 = vpop.f32.mrf.mxu0
        %1390 = vdwg.mxu0
        %v1391 = vld [vmem:[#allocation3] sm:$0xff]
        %1393 = vset.pattern.permute.xlu0 0
        %1394 = vperm.xlu0 %1393, %v1298
        %v1395 = vpop.permute.xlu0 %1394
        %v1397 = vmul.f32 %v1395, %v1391
        %1399 = vrot.lane.b32.xlu0 %v1388, 16
        %v1400 = vpop.permute.xlu0 %1399
        %v1402 = vadd.f32 %v1397, %v1400
        %vm1403 = vcmask 195712
        %1404 = vst.msk [vmem:[#allocation3] sm:$0xff] %vm1403, %v1402
        %1405 = vst.msk [vmem:[%s1290] sm:$0xff] %vm928, %v1295
        %v1406 = vld [vmem:[#allocation2] sm:$0xff]
        %1408 = vrot.lane.b32.xlu0 %v1406, 104
        %v1409 = vpop.permute.xlu0 %1408
        %1410 = vrot.lane.b32.xlu0 %v753, 104
        %v1411 = vpop.permute.xlu0 %1410
        %v1412 = vsel %vm829, %v1409, 0
        %v1414 = vsel %vm829, %v1411, 0
        %1416 = vmatprep.subr.mxu0 0.0
        %1417 = vmatpush1.xpose.msra.mxu0 0.0
        %1418 = vmatprep.subr.mxu0 0.0
        %1419 = vmatpush1.xpose.msra.mxu0 0.0
        %1420 = vmatprep.subr.mxu0 0.0
        %1421 = vmatpush1.xpose.msra.mxu0 0.0
        %1422 = vmatprep.subr.mxu0 0.0
        %1423 = vmatpush1.xpose.msra.mxu0 0.0
        %1424 = vmatprep.subr.mxu0 0.0
        %1425 = vmatpush1.xpose.msra.mxu0 0.0
        %1426 = vmatprep.subr.mxu0 0.0
        %1427 = vmatpush1.xpose.msra.mxu0 0.0
        %1428 = vmatprep.subr.mxu0 0.0
        %1429 = vmatpush1.xpose.msra.mxu0 0.0
        %1430 = vmatprep.subr.mxu0 0.0
        %1431 = vmatpush1.xpose.msra.mxu0 0.0
        %1432 = vmatprep.subr.mxu0 0.0
        %1433 = vmatpush1.xpose.msra.mxu0 0.0
        %1434 = vmatprep.subr.mxu0 0.0
        %1435 = vmatpush1.xpose.msra.mxu0 0.0
        %1436 = vmatprep.subr.mxu0 0.0
        %1437 = vmatpush1.xpose.msra.mxu0 0.0
        %1438 = vmatprep.subr.mxu0 0.0
        %1439 = vmatpush1.xpose.msra.mxu0 0.0
        %1440 = vmatprep.subr.mxu0 0.0
        %1441 = vmatpush1.xpose.msra.mxu0 0.0
        %1442 = vmatprep.subr.mxu0 0.0
        %1443 = vmatpush1.xpose.msra.mxu0 0.0
        %1444 = vmatprep.subr.mxu0 0.0
        %1445 = vmatpush1.xpose.msra.mxu0 0.0
        %1446 = vmatprep.subr.mxu0 0.0
        %1447 = vmatpush1.xpose.msra.mxu0 %v1414
        %1448 = vmatprep.subr.mxu0 0.0
        %1449 = vmatpush2.xpose.msra.mxu0 0.0
        %1450 = vmatprep.subr.mxu0 0.0
        %1451 = vmatpush2.xpose.msra.mxu0 0.0
        %1452 = vmatprep.subr.mxu0 0.0
        %1453 = vmatpush2.xpose.msra.mxu0 0.0
        %1454 = vmatprep.subr.mxu0 0.0
        %1455 = vmatpush2.xpose.msra.mxu0 0.0
        %1456 = vmatprep.subr.mxu0 0.0
        %1457 = vmatpush2.xpose.msra.mxu0 0.0
        %1458 = vmatprep.subr.mxu0 0.0
        %1459 = vmatpush2.xpose.msra.mxu0 0.0
        %1460 = vmatprep.subr.mxu0 0.0
        %1461 = vmatpush2.xpose.msra.mxu0 0.0
        %1462 = vmatprep.subr.mxu0 0.0
        %1463 = vmatpush2.xpose.msra.mxu0 0.0
        %1464 = vmatprep.subr.mxu0 0.0
        %1465 = vmatpush2.xpose.msra.mxu0 0.0
        %1466 = vmatprep.subr.mxu0 0.0
        %1467 = vmatpush2.xpose.msra.mxu0 0.0
        %1468 = vmatprep.subr.mxu0 0.0
        %1469 = vmatpush2.xpose.msra.mxu0 0.0
        %1470 = vmatprep.subr.mxu0 0.0
        %1471 = vmatpush2.xpose.msra.mxu0 0.0
        %1472 = vmatprep.subr.mxu0 0.0
        %1473 = vmatpush2.xpose.msra.mxu0 0.0
        %1474 = vmatprep.subr.mxu0 0.0
        %1475 = vmatpush2.xpose.msra.mxu0 0.0
        %1476 = vmatprep.subr.mxu0 0.0
        %1477 = vmatpush2.xpose.msra.mxu0 0.0
        %1478 = vmatprep.subr.mxu0 0.0
        %1479 = vmatpush2.xpose.msra.mxu0 0.0
        %1480 = vmatprep.mubr.f32.mxu0 0.0
        %1481 = vmatmul.mubr.f32.gmra.mxu0 %v1412
        %v1482 = vpop.f32.mrf.mxu0
        %v1483 = vadd.f32 0.0, %v1482
        %v1484 = vpop.f32.mrf.mxu0
        %1485 = vdwg.mxu0
        %s1486 = scalar_lea.vmem [#allocation4], 24
        %v1487 = vld [vmem:[%s1486] sm:$0xff]
        %v1488 = vsel %vm829, %v1483, -inf
        %1489 = vmax.xlane.f32.xlu0 %v1488
        %v1490 = vpop.xlane.xlu0 %1489
        %v1491 = vmax.f32 %v1487, %v1490
        %v1492 = vsub.f32 %v1487, %v1491
        %v1493 = vmul.f32 %v1492, 1.442695
        %v1494 = vpow.pop %v1493
        %1496 = vset.pattern.permute.xlu0 0
        %1497 = vperm.xlu0 %1496, %v1491
        %v1498 = vpop.permute.xlu0 %1497
        %v1500 = vsub.f32 %v1483, %v1498
        %v1501 = vmul.f32 %v1500, 1.442695
        %v1502 = vpow.pop %v1501
        %s1503 = scalar_lea.vmem [#allocation5], 24
        %v1504 = vld [vmem:[%s1503] sm:$0xff]
        %v1505 = vmul.f32 %v1494, %v1504
        %v1506 = vsel %vm829, %v1502, 0.0
        %1507 = vadd.xlane.f32.xlu0 %v1506
        %v1508 = vpop.xlane.xlu0 %1507
        %v1509 = vadd.f32 %v1505, %v1508
        %1510 = vst.msk [vmem:[%s1503] sm:$0xff] %vm928, %v1509
        %1511 = vrot.lane.b32.xlu0 %v825, 104
        %v1512 = vpop.permute.xlu0 %1511
        %v1515 = vsel %vm829, %v1502, 0
        %1517 = vmatprep.subr.mxu0 0.0
        %1518 = vmatpush1.msra.mxu0 0.0
        %1519 = vmatprep.subr.mxu0 0.0
        %1520 = vmatpush1.msra.mxu0 0.0
        %1521 = vmatprep.subr.mxu0 0.0
        %1522 = vmatpush1.msra.mxu0 0.0
        %1523 = vmatprep.subr.mxu0 0.0
        %1524 = vmatpush1.msra.mxu0 0.0
        %1525 = vmatprep.subr.mxu0 0.0
        %1526 = vmatpush1.msra.mxu0 0.0
        %1527 = vmatprep.subr.mxu0 0.0
        %1528 = vmatpush1.msra.mxu0 0.0
        %1529 = vmatprep.subr.mxu0 0.0
        %1530 = vmatpush1.msra.mxu0 0.0
        %1531 = vmatprep.subr.mxu0 0.0
        %1532 = vmatpush1.msra.mxu0 0.0
        %1533 = vmatprep.subr.mxu0 0.0
        %1534 = vmatpush1.msra.mxu0 0.0
        %1535 = vmatprep.subr.mxu0 0.0
        %1536 = vmatpush1.msra.mxu0 0.0
        %1537 = vmatprep.subr.mxu0 0.0
        %1538 = vmatpush1.msra.mxu0 0.0
        %1539 = vmatprep.subr.mxu0 0.0
        %1540 = vmatpush1.msra.mxu0 0.0
        %1541 = vmatprep.subr.mxu0 0.0
        %1542 = vmatpush1.msra.mxu0 0.0
        %1543 = vmatprep.subr.mxu0 0.0
        %1544 = vmatpush1.msra.mxu0 0.0
        %1545 = vmatprep.subr.mxu0 0.0
        %1546 = vmatpush1.msra.mxu0 0.0
        %1547 = vmatprep.subr.mxu0 0.0
        %1548 = vmatpush1.msra.mxu0 %v1512
        %1549 = vmatprep.subr.mxu0 0.0
        %1550 = vmatpush2.msra.mxu0 0.0
        %1551 = vmatprep.subr.mxu0 0.0
        %1552 = vmatpush2.msra.mxu0 0.0
        %1553 = vmatprep.subr.mxu0 0.0
        %1554 = vmatpush2.msra.mxu0 0.0
        %1555 = vmatprep.subr.mxu0 0.0
        %1556 = vmatpush2.msra.mxu0 0.0
        %1557 = vmatprep.subr.mxu0 0.0
        %1558 = vmatpush2.msra.mxu0 0.0
        %1559 = vmatprep.subr.mxu0 0.0
        %1560 = vmatpush2.msra.mxu0 0.0
        %1561 = vmatprep.subr.mxu0 0.0
        %1562 = vmatpush2.msra.mxu0 0.0
        %1563 = vmatprep.subr.mxu0 0.0
        %1564 = vmatpush2.msra.mxu0 0.0
        %1565 = vmatprep.subr.mxu0 0.0
        %1566 = vmatpush2.msra.mxu0 0.0
        %1567 = vmatprep.subr.mxu0 0.0
        %1568 = vmatpush2.msra.mxu0 0.0
        %1569 = vmatprep.subr.mxu0 0.0
        %1570 = vmatpush2.msra.mxu0 0.0
        %1571 = vmatprep.subr.mxu0 0.0
        %1572 = vmatpush2.msra.mxu0 0.0
        %1573 = vmatprep.subr.mxu0 0.0
        %1574 = vmatpush2.msra.mxu0 0.0
        %1575 = vmatprep.subr.mxu0 0.0
        %1576 = vmatpush2.msra.mxu0 0.0
        %1577 = vmatprep.subr.mxu0 0.0
        %1578 = vmatpush2.msra.mxu0 0.0
        %1579 = vmatprep.subr.mxu0 0.0
        %1580 = vmatpush2.msra.mxu0 0.0
        %1581 = vmatprep.mubr.f32.mxu0 0.0
        %1582 = vmatmul.mubr.f32.gmra.mxu0 %v1515
        %v1583 = vpop.f32.mrf.mxu0
        %v1584 = vadd.f32 0.0, %v1583
        %v1585 = vpop.f32.mrf.mxu0
        %1586 = vdwg.mxu0
        %v1587 = vld [vmem:[#allocation3] sm:$0xff]
        %1589 = vset.pattern.permute.xlu0 0
        %1590 = vperm.xlu0 %1589, %v1494
        %v1591 = vpop.permute.xlu0 %1590
        %v1593 = vmul.f32 %v1591, %v1587
        %1595 = vrot.lane.b32.xlu0 %v1584, 24
        %v1596 = vpop.permute.xlu0 %1595
        %v1598 = vadd.f32 %v1593, %v1596
        %vm1599 = vcmask 261312
        %1600 = vst.msk [vmem:[#allocation3] sm:$0xff] %vm1599, %v1598
        %1601 = vst.msk [vmem:[%s1486] sm:$0xff] %vm928, %v1491
        %p1602 = scmp.eq.s32.totalorder %s40, 1
        // Predicated region
        $region93: #{tpu_custom_call.1} parent=63 // pred_check
          %p1603 = pneg %p1602
        $region94: #{tpu_custom_call.1} parent=63 // pred_check_branch
          %1605 = sbr.rel (%p1603) target = $region96
        $region95: #{tpu_custom_call.1} parent=63 // pred_region
          %v1606 = vld [vmem:[#allocation5] sm:$0xff]
          %v1607 = vrcp.pop %v1606
          %v1608 = vld [vmem:[#allocation3] sm:$0xff]
          %1610 = vset.pattern.permute.xlu0 0
          %1611 = vperm.xlu0 %1610, %v1607
          %v1612 = vpop.permute.xlu0 %1611
          %v1614 = vmul.f32 %v1608, %v1612
          %1615 = vst.msk [vmem:[#allocation3] sm:$0xff] %vm829, %v1614
          %v1616 = vld [vmem:[%s1110] sm:$0xff]
          %v1617 = vrcp.pop %v1616
          %v1618 = vld [vmem:[#allocation3] sm:$0xff]
          %1620 = vset.pattern.permute.xlu0 0
          %1621 = vperm.xlu0 %1620, %v1617
          %v1622 = vpop.permute.xlu0 %1621
          %v1624 = vmul.f32 %v1618, %v1622
          %1625 = vst.msk [vmem:[#allocation3] sm:$0xff] %vm1207, %v1624
          %v1626 = vld [vmem:[%s1307] sm:$0xff]
          %v1627 = vrcp.pop %v1626
          %v1628 = vld [vmem:[#allocation3] sm:$0xff]
          %1630 = vset.pattern.permute.xlu0 0
          %1631 = vperm.xlu0 %1630, %v1627
          %v1632 = vpop.permute.xlu0 %1631
          %v1634 = vmul.f32 %v1628, %v1632
          %1635 = vst.msk [vmem:[#allocation3] sm:$0xff] %vm1403, %v1634
          %v1636 = vld [vmem:[%s1503] sm:$0xff]
          %v1637 = vrcp.pop %v1636
          %v1638 = vld [vmem:[#allocation3] sm:$0xff]
          %1640 = vset.pattern.permute.xlu0 0
          %1641 = vperm.xlu0 %1640, %v1637
          %v1642 = vpop.permute.xlu0 %1641
          %v1644 = vmul.f32 %v1638, %v1642
          %1645 = vst.msk [vmem:[#allocation3] sm:$0xff] %vm1599, %v1644
          %v1646 = vld [vmem:[#allocation3] sm:$0xff]
          %v1647 = vld [vmem:[#allocation15] sm:$0xff]
          %v1648 = vld [vmem:[#allocation15 + $0x8] sm:$0xff]
          %v1649 = vld [vmem:[#allocation15 + $0x10] sm:$0xff]
          %v1650 = vld [vmem:[#allocation15 + $0x18] sm:$0xff]
          %v1651 = vld [vmem:[%s10] sm:$0x1]
          %v1653 = vlaneseq
          %v1654 = vshrl.u32 %v1653, 7
          %v1655 = vsub.s32 0, %v1654
          %v1656 = vrot.slane %v1651, %v1655
          %vm1658 = vcmask 261120
          %v1660 = vsel %vm1658, %v1646, 0
          %1662 = vmatprep.subr.mxu0 0.0
          %1663 = vmatpush1.msra.mxu0 0.0
          %1664 = vmatprep.subr.mxu0 0.0
          %1665 = vmatpush1.msra.mxu0 0.0
          %1666 = vmatprep.subr.mxu0 0.0
          %1667 = vmatpush1.msra.mxu0 0.0
          %1668 = vmatprep.subr.mxu0 0.0
          %1669 = vmatpush1.msra.mxu0 0.0
          %1670 = vmatprep.subr.mxu0 0.0
          %1671 = vmatpush1.msra.mxu0 0.0
          %1672 = vmatprep.subr.mxu0 0.0
          %1673 = vmatpush1.msra.mxu0 0.0
          %1674 = vmatprep.subr.mxu0 0.0
          %1675 = vmatpush1.msra.mxu0 0.0
          %1676 = vmatprep.subr.mxu0 0.0
          %1677 = vmatpush1.msra.mxu0 0.0
          %1678 = vmatprep.subr.mxu0 0.0
          %1679 = vmatpush1.msra.mxu0 0.0
          %1680 = vmatprep.subr.mxu0 0.0
          %1681 = vmatpush1.msra.mxu0 0.0
          %1682 = vmatprep.subr.mxu0 0.0
          %1683 = vmatpush1.msra.mxu0 0.0
          %1684 = vmatprep.subr.mxu0 0.0
          %1685 = vmatpush1.msra.mxu0 0.0
          %1686 = vmatprep.subr.mxu0 0.0
          %1687 = vmatpush1.msra.mxu0 %v1650
          %1688 = vmatprep.subr.mxu0 0.0
          %1689 = vmatpush1.msra.mxu0 %v1649
          %1690 = vmatprep.subr.mxu0 0.0
          %1691 = vmatpush1.msra.mxu0 %v1648
          %1692 = vmatprep.subr.mxu0 0.0
          %1693 = vmatpush1.msra.mxu0 %v1647
          %1694 = vmatprep.subr.mxu0 0.0
          %1695 = vmatpush2.msra.mxu0 0.0
          %1696 = vmatprep.subr.mxu0 0.0
          %1697 = vmatpush2.msra.mxu0 0.0
          %1698 = vmatprep.subr.mxu0 0.0
          %1699 = vmatpush2.msra.mxu0 0.0
          %1700 = vmatprep.subr.mxu0 0.0
          %1701 = vmatpush2.msra.mxu0 0.0
          %1702 = vmatprep.subr.mxu0 0.0
          %1703 = vmatpush2.msra.mxu0 0.0
          %1704 = vmatprep.subr.mxu0 0.0
          %1705 = vmatpush2.msra.mxu0 0.0
          %1706 = vmatprep.subr.mxu0 0.0
          %1707 = vmatpush2.msra.mxu0 0.0
          %1708 = vmatprep.subr.mxu0 0.0
          %1709 = vmatpush2.msra.mxu0 0.0
          %1710 = vmatprep.subr.mxu0 0.0
          %1711 = vmatpush2.msra.mxu0 0.0
          %1712 = vmatprep.subr.mxu0 0.0
          %1713 = vmatpush2.msra.mxu0 0.0
          %1714 = vmatprep.subr.mxu0 0.0
          %1715 = vmatpush2.msra.mxu0 0.0
          %1716 = vmatprep.subr.mxu0 0.0
          %1717 = vmatpush2.msra.mxu0 0.0
          %1718 = vmatprep.subr.mxu0 0.0
          %1719 = vmatpush2.msra.mxu0 0.0
          %1720 = vmatprep.subr.mxu0 0.0
          %1721 = vmatpush2.msra.mxu0 0.0
          %1722 = vmatprep.subr.mxu0 0.0
          %1723 = vmatpush2.msra.mxu0 0.0
          %1724 = vmatprep.subr.mxu0 0.0
          %1725 = vmatpush2.msra.mxu0 0.0
          %1726 = vmatprep.mubr.f32.mxu0 0.0
          %1727 = vmatmul.mubr.f32.gmra.mxu0 %v1660
          %v1728 = vpop.f32.mrf.mxu0
          %v1729 = vadd.f32 %v1656, %v1728
          %v1730 = vpop.f32.mrf.mxu0
          %1731 = vdwg.mxu0
          %1732 = vst [vmem:[%s524] sm:$0xff] %v1729
        $region96: #{tpu_custom_call.1} parent=63 // pred_fallthru
          _
        %s1733 = sand.u32 %s307, 1
        %s1734 = scalar_lea.sflag [#allocation8], %s1733
        %s1735 = sand.u32 %s307, 1
        %s1736 = smul.addr %s1735, 8
        %s1737 = scalar_lea.vmem [#allocation17], %s1736
        // Predicated region
        $region97: #{tpu_custom_call.1} parent=63 // pred_check
          %p1738 = pneg %p317
        $region98: #{tpu_custom_call.1} parent=63 // pred_check_branch
          %1740 = sbr.rel (%p1738) target = $region100
        $region99: #{tpu_custom_call.1} parent=63 // pred_region
          %s1742 = ssub.s32 128, 128
          %1743 = vsyncadd %s1734, %s1742
          %s1744 = sadd.s32 %s39, %s38
          %s1745 = smul.addr %s1744, 128
          %s1746 = scalar_lea.hbm %s11, %s1745
          %s1748 = sshll.u32 %s1737, 4
          %s1749 = int_to_ptr.vmem [resolvable:$true] %s1748
          %1751 = dma.vmem_to_hbm [thread:$0]  %s1749, 128, %s1746, %s1734
        $region100: #{tpu_custom_call.1} parent=63 // pred_fallthru
          _
      $region64: #{tpu_custom_call.1} parent=5 // pred_fallthru
        _
      %p1752 = scmp.le.s32.totalorder 2, %s28
      // Predicated region
      $region101: #{tpu_custom_call.1} parent=5 // pred_check
        %p1753 = pneg %p1752
      $region102: #{tpu_custom_call.1} parent=5 // pred_check_branch
        %1755 = sbr.rel (%p1753) target = $region104
      $region103: #{tpu_custom_call.1} parent=5 // pred_region
        %s1756 = ssub.s32 %s28, 2
        // Predicated region
        $region105: #{tpu_custom_call.1} parent=103 // pred_check
          %p1757 = pneg %p323
        $region106: #{tpu_custom_call.1} parent=103 // pred_check_branch
          %1759 = sbr.rel (%p1757) target = $region108
        $region107: #{tpu_custom_call.1} parent=103 // pred_region
          %s1760 = sand.u32 %s308, 1
          %s1761 = scalar_lea.sflag [#allocation8], %s1760
          %s1762 = sand.u32 %s308, 1
          %s1763 = smul.addr %s1762, 8
          %s1764 = scalar_lea.vmem [#allocation17], %s1763
          %1765 = dma.done %s1761, 128
        $region108: #{tpu_custom_call.1} parent=103 // pred_fallthru
          _
      $region104: #{tpu_custom_call.1} parent=5 // pred_fallthru
        _
    $region6: #{tpu_custom_call.1} parent=1 // loop_footer
      %s32 = sadd.s32 1, %s28
    $region7: #{tpu_custom_call.1} parent=1 // loop_footer_branch
      %27 = sbr.rel target = $region3
    $region8: #{tpu_custom_call.1} parent=1 // loop_exit
      _
    %1766 = vsyncpa [#allocation7], 1
    %s1767 = scalar_lea.sflag [#allocation7], 1
    %1768 = vsyncpa %s1767, 1
    %1769 = vsyncpa [#allocation10], 1
    %s1770 = scalar_lea.sflag [#allocation10], 1
    %1771 = vsyncpa %s1770, 1
    %1772 = vsyncpa [#allocation13], 1
    %1773 = vsyncpa [#allocation16], 1
    %1774 = vsyncpa [#allocation8], 1
    %s1775 = scalar_lea.sflag [#allocation8], 1
    %1776 = vsyncpa %s1775, 1

</llo_original>
